<compile_context>
chip_gen: v7x
topology: tpu7x:2x2x1
jax: 0.10.0
libtpu: 0.0.40
codegen_flags: <defaults>
</compile_context>

<pallas_src>
import functools

import jax
import jax.numpy as jnp
from jax.experimental import pallas as pl
from jax.experimental.pallas import tpu as pltpu


# -----------------------------------------------------------------------------
# Fused kernel: 2-layer LSTM recurrence (wavefront) + Linear head
# -----------------------------------------------------------------------------
def _lstmc_fused_kernel(
    x_ref,      # (T*B, D_in) f32   time-major, flattened input
    wih0_ref,   # (D_in, 4H)  bf16  layer-0 W_ih^T
    b0_ref,     # (1, 4H)     f32   layer-0 b_ih + b_hh
    wbig_ref,   # (2H, 8H)    bf16  wavefront-stacked [[Whh0, Wih1], [0, Whh1]]
    b1_ref,     # (1, 4H)     f32   layer-1 b_ih + b_hh
    wlin_ref,   # (H, C)      bf16  Linear W^T
    blin_ref,   # (1, C)      f32   Linear b
    out_ref,    # (B, C)
    *,
    seq_len,
    batch,
    hidden,
):
    T, B, H = seq_len, batch, hidden
    G = 4 * H

    # One batched input-projection matmul for ALL timesteps of layer 0
    # (off the serial recurrence path).  Kept as a value: 2 vregs at T*B=16.
    xw = (
        jnp.dot(x_ref[...].astype(jnp.bfloat16), wih0_ref[...],
                preferred_element_type=jnp.float32)
        + b0_ref[...]
    )                                                  # (T*B, 4H) f32

    wbig = wbig_ref[...]                               # hoisted weight load
    b1 = jnp.broadcast_to(b1_ref[...], (B, G))         # hoisted broadcast

    def act(gates, c_prev):
        # PyTorch gate order i, f, g, o.  Full-width sigmoid + tanh once,
        # then lane-group picks (3 EUP pushes instead of 5).
        sg = jax.nn.sigmoid(gates)
        tg = jnp.tanh(gates)
        # TODO(synk): with H < 128 these 32-lane slices are XLU lane selects
        # on the serial path; padding H to 128 would make them free vreg
        # selects but costs extra EUP vregs -- left as-is (modest).
        i_g = sg[:, 0 * H:1 * H]
        f_g = sg[:, 1 * H:2 * H]
        g_g = tg[:, 2 * H:3 * H]
        o_g = sg[:, 3 * H:4 * H]
        c_new = f_g * c_prev + i_g * g_g
        h_new = o_g * jnp.tanh(c_new)
        return h_new, c_new

    zeros = jnp.zeros((B, H), jnp.float32)

    # Prologue (t = 0): h0(-1) = 0, so layer-0 gates are just xw[0]; no matmul.
    h0, c0 = act(xw[0:B, :], zeros)          # layer-0 state at t = 0
    h1, c1 = zeros, zeros                    # layer-1 state at t = -1

    # Wavefront main loop (fully unrolled; T = 8).  Iteration t advances
    # layer-0 to time t and layer-1 to time t-1 from ONE combined matmul.
    # NOTE: for long seq_len switch to lax.fori_loop with partial unroll and
    # a (T, B, 4H) VMEM scratch for xw to bound code size / live ranges.
    for t in range(1, T):
        lhs = jnp.concatenate([h0, h1], axis=1).astype(jnp.bfloat16)  # (B,2H)
        gg = jnp.dot(lhs, wbig, preferred_element_type=jnp.float32)   # (B,8H)
        g0 = xw[t * B:(t + 1) * B, :] + gg[:, :G]   # layer-0 gates, time t
        g1 = gg[:, G:] + b1                          # layer-1 gates, time t-1
        h1, c1 = act(g1, c1)                         # layer-1 -> time t-1
        h0, c0 = act(g0, c0)                         # layer-0 -> time t

    # Epilogue: layer-1 at time T-1.  (nn.LSTM inter-layer dropout is
    # identity in inference mode.)
    lhs = jnp.concatenate([h0, h1], axis=1).astype(jnp.bfloat16)
    gg = jnp.dot(lhs, wbig, preferred_element_type=jnp.float32)
    h1, c1 = act(gg[:, G:] + b1, c1)

    # Linear head on the last timestep's layer-1 hidden state.
    out_ref[...] = (
        jnp.dot(h1.astype(jnp.bfloat16), wlin_ref[...],
                preferred_element_type=jnp.float32)
        + blin_ref[...]
    ).astype(out_ref.dtype)


# -----------------------------------------------------------------------------
# Wrapper
# -----------------------------------------------------------------------------
@jax.jit
def lstmc_forward(x, params):
    """Forward pass of LSTMC.

    x: (B, input_size, T) -- PyTorch NCT layout.  Matches
       `self.lstm(x.permute(0, 2, 1))` followed by `linear(output[:, -1, :])`.
    """
    B, D_in, T = x.shape
    assert len(params["lstm"]) == 2, "kernel is specialized to num_layers=2"
    l0, l1 = params["lstm"]
    H = l0["whh_t"].shape[0]
    wlin_t = params["linear"]["w_t"]
    C_out = wlin_t.shape[1]

    # (B, C, T) -> (T, B, C) -> (T*B, C): time-major, flattened so the kernel
    # does a single batched input-projection matmul for all timesteps.
    x_flat = jnp.transpose(x, (2, 0, 1)).reshape(T * B, D_in)

    # Wavefront-stacked layer weights (built once, outside the loop):
    #   [[Whh0, Wih1],
    #    [  0 , Whh1]]   shape (2H, 8H)
    top = jnp.concatenate([l0["whh_t"], l1["wih_t"]], axis=1)
    bot = jnp.concatenate(
        [jnp.zeros((H, 4 * H), jnp.float32), l1["whh_t"]], axis=1)
    wbig = jnp.concatenate([top, bot], axis=0)

    # bf16 MXU operands (cast weights once; f32 accumulation in-kernel).
    wih0_bf = l0["wih_t"].astype(jnp.bfloat16)
    wbig_bf = wbig.astype(jnp.bfloat16)
    wlin_bf = wlin_t.astype(jnp.bfloat16)

    kernel = functools.partial(
        _lstmc_fused_kernel, seq_len=T, batch=B, hidden=H)

    # TODO(synk): when T*B grows, chunk the up-front input projection over T
    # (grid axis / emit_pipeline) before the (T*B, 4H) value exceeds VMEM;
    # v7x (64 MiB physical) hits that wall first.  A leading batch grid axis
    # with dimension_semantics=("parallel",) would also let v7x's 2 TCs split
    # batch rows -- pointless at B=2.
    return pl.pallas_call(
        kernel,
        out_shape=jax.ShapeDtypeStruct((B, C_out), x.dtype),
        in_specs=[
            pl.BlockSpec((T * B, D_in), lambda: (0, 0)),
            pl.BlockSpec((D_in, 4 * H), lambda: (0, 0)),
            pl.BlockSpec((1, 4 * H), lambda: (0, 0)),
            pl.BlockSpec((2 * H, 8 * H), lambda: (0, 0)),
            pl.BlockSpec((1, 4 * H), lambda: (0, 0)),
            pl.BlockSpec((H, C_out), lambda: (0, 0)),
            pl.BlockSpec((1, C_out), lambda: (0, 0)),
        ],
        out_specs=pl.BlockSpec((B, C_out), lambda: (0, 0)),
        compiler_params=pltpu.CompilerParams(
            vmem_limit_bytes=32 * 1024 * 1024),
    )(
        x_flat,
        wih0_bf, l0["bias"].reshape(1, 4 * H),
        wbig_bf, l1["bias"].reshape(1, 4 * H),
        wlin_bf, params["linear"]["b"].reshape(1, C_out),
    )


# -----------------------------------------------------------------------------
# Pure-JAX reference (same math, f32 everywhere) for a correctness check
# -----------------------------------------------------------------------------
def lstmc_reference(x, params):
    h = jnp.transpose(x, (0, 2, 1))  # (B, T, D_in)
    B, T, _ = h.shape
    for layer in params["lstm"]:
        H = layer["whh_t"].shape[0]
        h_t = jnp.zeros((B, H), jnp.float32)
        c_t = jnp.zeros((B, H), jnp.float32)
        outs = []
        for t in range(T):
            gates = h[:, t, :] @ layer["wih_t"] + h_t @ layer["whh_t"] + layer["bias"]
            i_g = jax.nn.sigmoid(gates[:, 0 * H:1 * H])
            f_g = jax.nn.sigmoid(gates[:, 1 * H:2 * H])
            g_g = jnp.tanh(gates[:, 2 * H:3 * H])
            o_g = jax.nn.sigmoid(gates[:, 3 * H:4 * H])
            c_t = f_g * c_t + i_g * g_g
            h_t = o_g * jnp.tanh(c_t)
            outs.append(h_t)
        h = jnp.stack(outs, axis=1)
    return h[:, -1, :] @ params["linear"]["w_t"] + params["linear"]["b"]


# -----------------------------------------------------------------------------
# Deterministic parameter init (PyTorch shapes / U(-1/sqrt(H), 1/sqrt(H)))
# -----------------------------------------------------------------------------
def init_params(key, input_size, hidden_size, num_layers, num_classes):
    k = 1.0 / jnp.sqrt(jnp.array(hidden_size, jnp.float32))
    params = {"lstm": [], "linear": {}}
    for layer in range(num_layers):
        d_in = input_size if layer == 0 else hidden_size
        key, k1, k2, k3, k4 = jax.random.split(key, 5)
        w_ih = jax.random.uniform(k1, (4 * hidden_size, d_in), jnp.float32, -k, k)
        w_hh = jax.random.uniform(k2, (4 * hidden_size, hidden_size), jnp.float32, -k, k)
        b_ih = jax.random.uniform(k3, (4 * hidden_size,), jnp.float32, -k, k)
        b_hh = jax.random.uniform(k4, (4 * hidden_size,), jnp.float32, -k, k)
        params["lstm"].append(
            {"wih_t": w_ih.T, "whh_t": w_hh.T, "bias": b_ih + b_hh}
        )
    key, k1, k2 = jax.random.split(key, 3)
    w = jax.random.uniform(k1, (num_classes, hidden_size), jnp.float32, -k, k)
    b = jax.random.uniform(k2, (num_classes,), jnp.float32, -k, k)
    params["linear"] = {"w_t": w.T, "b": b}
    return params


if __name__ == "__main__":
    # Small shapes consistent with the module: input_size=22 (module default),
    # num_classes=4, 2 layers; hidden/seq/batch kept small.
    BATCH, INPUT_SIZE, SEQ = 2, 22, 8
    HIDDEN, NUM_LAYERS, NUM_CLASSES = 32, 2, 4

    key = jax.random.PRNGKey(0)
    key, pkey, xkey = jax.random.split(key, 3)
    params = init_params(pkey, INPUT_SIZE, HIDDEN, NUM_LAYERS, NUM_CLASSES)

    # x in PyTorch layout (B, C=input_size, T)
    x = jax.random.normal(xkey, (BATCH, INPUT_SIZE, SEQ), jnp.float32)

    out = lstmc_forward(x, params)
    jax.block_until_ready(out)
    assert out.shape == (BATCH, NUM_CLASSES), out.shape

    ref = lstmc_reference(x, params)
    max_err = float(jnp.max(jnp.abs(out - ref)))
    # bf16 MXU operands (f32 accumulation) => not bit-exact vs the f32
    # reference; observed error is ~1e-3, validated against a 2e-2 tolerance.
    assert jnp.allclose(out, ref, rtol=2e-2, atol=2e-2), max_err

    # TODO(synk): nn.LSTM inter-layer dropout applies only in training mode;
    # the inference forward implemented here treats it as identity.
    print("KERNEL_OK")
</pallas_src>

<mosaic_0001>
module attributes {stable_mosaic.version = 11 : i64} {
  func.func @_lstmc_fused_kernel(%arg0: memref<16x22xf32, #tpu.memory_space<vmem>>, %arg1: memref<22x128xbf16, #tpu.memory_space<vmem>>, %arg2: memref<1x128xf32, #tpu.memory_space<vmem>>, %arg3: memref<64x256xbf16, #tpu.memory_space<vmem>>, %arg4: memref<1x128xf32, #tpu.memory_space<vmem>>, %arg5: memref<32x4xbf16, #tpu.memory_space<vmem>>, %arg6: memref<1x4xf32, #tpu.memory_space<vmem>>, %arg7: memref<2x4xf32, #tpu.memory_space<vmem>>) attributes {dimension_semantics = [], scalar_prefetch = 0 : i64, scratch_operands = 0 : i64, tpu.core_type = #tpu.core_type<tc>} {
    %c0 = arith.constant 0 : index
    %c0_0 = arith.constant 0 : index
    %0 = vector.load %arg0[%c0, %c0_0] : memref<16x22xf32, #tpu.memory_space<vmem>>, vector<16x22xf32>
    %1 = arith.truncf %0 : vector<16x22xf32> to vector<16x22xbf16>
    %c0_1 = arith.constant 0 : index
    %c0_2 = arith.constant 0 : index
    %2 = vector.load %arg1[%c0_1, %c0_2] : memref<22x128xbf16, #tpu.memory_space<vmem>>, vector<22x128xbf16>
    %cst = arith.constant dense<0.000000e+00> : vector<16x128xf32>
    %3 = tpu.matmul %1, %2, %cst {dimension_numbers = #tpu.dot_dimension_numbers<[1], [0], [0], [1], [0, 0, 1, 1], [], []>} : vector<16x22xbf16>, vector<22x128xbf16>, vector<16x128xf32> -> vector<16x128xf32>
    %c0_3 = arith.constant 0 : index
    %c0_4 = arith.constant 0 : index
    %4 = vector.load %arg2[%c0_3, %c0_4] : memref<1x128xf32, #tpu.memory_space<vmem>>, vector<1x128xf32>
    %5 = vector.broadcast %4 : vector<1x128xf32> to vector<16x128xf32>
    %6 = arith.addf %3, %5 : vector<16x128xf32>
    %c0_5 = arith.constant 0 : index
    %c0_6 = arith.constant 0 : index
    %7 = vector.load %arg3[%c0_5, %c0_6] : memref<64x256xbf16, #tpu.memory_space<vmem>>, vector<64x256xbf16>
    %c0_7 = arith.constant 0 : index
    %c0_8 = arith.constant 0 : index
    %8 = vector.load %arg4[%c0_7, %c0_8] : memref<1x128xf32, #tpu.memory_space<vmem>>, vector<1x128xf32>
    %9 = vector.shape_cast %8 : vector<1x128xf32> to vector<1x128xf32>
    %10 = vector.broadcast %9 : vector<1x128xf32> to vector<2x128xf32>
    %cst_9 = arith.constant 0.000000e+00 : f32
    %11 = vector.broadcast %cst_9 : f32 to vector<2x32xf32>
    %12 = vector.extract_strided_slice %6 {offsets = [0, 0], sizes = [2, 128], strides = [1, 1]} : vector<16x128xf32> to vector<2x128xf32>
    %13 = arith.negf %12 : vector<2x128xf32>
    %14 = math.exp %13 : vector<2x128xf32>
    %cst_10 = arith.constant 1.000000e+00 : f32
    %15 = vector.broadcast %cst_10 : f32 to vector<2x128xf32>
    %16 = arith.addf %15, %14 : vector<2x128xf32>
    %17 = arith.divf %15, %16 : vector<2x128xf32>
    %18 = math.tanh %12 : vector<2x128xf32>
    %19 = vector.extract_strided_slice %17 {offsets = [0, 0], sizes = [2, 32], strides = [1, 1]} : vector<2x128xf32> to vector<2x32xf32>
    %20 = vector.extract_strided_slice %17 {offsets = [0, 32], sizes = [2, 32], strides = [1, 1]} : vector<2x128xf32> to vector<2x32xf32>
    %21 = vector.extract_strided_slice %18 {offsets = [0, 64], sizes = [2, 32], strides = [1, 1]} : vector<2x128xf32> to vector<2x32xf32>
    %22 = vector.extract_strided_slice %17 {offsets = [0, 96], sizes = [2, 32], strides = [1, 1]} : vector<2x128xf32> to vector<2x32xf32>
    %23 = arith.mulf %20, %11 : vector<2x32xf32>
    %24 = arith.mulf %19, %21 : vector<2x32xf32>
    %25 = arith.addf %23, %24 : vector<2x32xf32>
    %26 = math.tanh %25 : vector<2x32xf32>
    %27 = arith.mulf %22, %26 : vector<2x32xf32>
    %28 = tpu.concatenate %27, %11 in 1 : vector<2x32xf32>, vector<2x32xf32> -> vector<2x64xf32>
    %29 = arith.truncf %28 : vector<2x64xf32> to vector<2x64xbf16>
    %cst_11 = arith.constant dense<0.000000e+00> : vector<2x256xf32>
    %30 = tpu.matmul %29, %7, %cst_11 {dimension_numbers = #tpu.dot_dimension_numbers<[1], [0], [0], [1], [0, 0, 1, 1], [], []>} : vector<2x64xbf16>, vector<64x256xbf16>, vector<2x256xf32> -> vector<2x256xf32>
    %31 = vector.extract_strided_slice %6 {offsets = [2, 0], sizes = [2, 128], strides = [1, 1]} : vector<16x128xf32> to vector<2x128xf32>
    %32 = vector.extract_strided_slice %30 {offsets = [0, 0], sizes = [2, 128], strides = [1, 1]} : vector<2x256xf32> to vector<2x128xf32>
    %33 = arith.addf %31, %32 : vector<2x128xf32>
    %34 = vector.extract_strided_slice %30 {offsets = [0, 128], sizes = [2, 128], strides = [1, 1]} : vector<2x256xf32> to vector<2x128xf32>
    %35 = arith.addf %34, %10 : vector<2x128xf32>
    %36 = arith.negf %35 : vector<2x128xf32>
    %37 = math.exp %36 : vector<2x128xf32>
    %cst_12 = arith.constant 1.000000e+00 : f32
    %38 = vector.broadcast %cst_12 : f32 to vector<2x128xf32>
    %39 = arith.addf %38, %37 : vector<2x128xf32>
    %40 = arith.divf %38, %39 : vector<2x128xf32>
    %41 = math.tanh %35 : vector<2x128xf32>
    %42 = vector.extract_strided_slice %40 {offsets = [0, 0], sizes = [2, 32], strides = [1, 1]} : vector<2x128xf32> to vector<2x32xf32>
    %43 = vector.extract_strided_slice %40 {offsets = [0, 32], sizes = [2, 32], strides = [1, 1]} : vector<2x128xf32> to vector<2x32xf32>
    %44 = vector.extract_strided_slice %41 {offsets = [0, 64], sizes = [2, 32], strides = [1, 1]} : vector<2x128xf32> to vector<2x32xf32>
    %45 = vector.extract_strided_slice %40 {offsets = [0, 96], sizes = [2, 32], strides = [1, 1]} : vector<2x128xf32> to vector<2x32xf32>
    %46 = arith.mulf %43, %11 : vector<2x32xf32>
    %47 = arith.mulf %42, %44 : vector<2x32xf32>
    %48 = arith.addf %46, %47 : vector<2x32xf32>
    %49 = math.tanh %48 : vector<2x32xf32>
    %50 = arith.mulf %45, %49 : vector<2x32xf32>
    %51 = arith.negf %33 : vector<2x128xf32>
    %52 = math.exp %51 : vector<2x128xf32>
    %cst_13 = arith.constant 1.000000e+00 : f32
    %53 = vector.broadcast %cst_13 : f32 to vector<2x128xf32>
    %54 = arith.addf %53, %52 : vector<2x128xf32>
    %55 = arith.divf %53, %54 : vector<2x128xf32>
    %56 = math.tanh %33 : vector<2x128xf32>
    %57 = vector.extract_strided_slice %55 {offsets = [0, 0], sizes = [2, 32], strides = [1, 1]} : vector<2x128xf32> to vector<2x32xf32>
    %58 = vector.extract_strided_slice %55 {offsets = [0, 32], sizes = [2, 32], strides = [1, 1]} : vector<2x128xf32> to vector<2x32xf32>
    %59 = vector.extract_strided_slice %56 {offsets = [0, 64], sizes = [2, 32], strides = [1, 1]} : vector<2x128xf32> to vector<2x32xf32>
    %60 = vector.extract_strided_slice %55 {offsets = [0, 96], sizes = [2, 32], strides = [1, 1]} : vector<2x128xf32> to vector<2x32xf32>
    %61 = arith.mulf %58, %25 : vector<2x32xf32>
    %62 = arith.mulf %57, %59 : vector<2x32xf32>
    %63 = arith.addf %61, %62 : vector<2x32xf32>
    %64 = math.tanh %63 : vector<2x32xf32>
    %65 = arith.mulf %60, %64 : vector<2x32xf32>
    %66 = tpu.concatenate %65, %50 in 1 : vector<2x32xf32>, vector<2x32xf32> -> vector<2x64xf32>
    %67 = arith.truncf %66 : vector<2x64xf32> to vector<2x64xbf16>
    %cst_14 = arith.constant dense<0.000000e+00> : vector<2x256xf32>
    %68 = tpu.matmul %67, %7, %cst_14 {dimension_numbers = #tpu.dot_dimension_numbers<[1], [0], [0], [1], [0, 0, 1, 1], [], []>} : vector<2x64xbf16>, vector<64x256xbf16>, vector<2x256xf32> -> vector<2x256xf32>
    %69 = vector.extract_strided_slice %6 {offsets = [4, 0], sizes = [2, 128], strides = [1, 1]} : vector<16x128xf32> to vector<2x128xf32>
    %70 = vector.extract_strided_slice %68 {offsets = [0, 0], sizes = [2, 128], strides = [1, 1]} : vector<2x256xf32> to vector<2x128xf32>
    %71 = arith.addf %69, %70 : vector<2x128xf32>
    %72 = vector.extract_strided_slice %68 {offsets = [0, 128], sizes = [2, 128], strides = [1, 1]} : vector<2x256xf32> to vector<2x128xf32>
    %73 = arith.addf %72, %10 : vector<2x128xf32>
    %74 = arith.negf %73 : vector<2x128xf32>
    %75 = math.exp %74 : vector<2x128xf32>
    %cst_15 = arith.constant 1.000000e+00 : f32
    %76 = vector.broadcast %cst_15 : f32 to vector<2x128xf32>
    %77 = arith.addf %76, %75 : vector<2x128xf32>
    %78 = arith.divf %76, %77 : vector<2x128xf32>
    %79 = math.tanh %73 : vector<2x128xf32>
    %80 = vector.extract_strided_slice %78 {offsets = [0, 0], sizes = [2, 32], strides = [1, 1]} : vector<2x128xf32> to vector<2x32xf32>
    %81 = vector.extract_strided_slice %78 {offsets = [0, 32], sizes = [2, 32], strides = [1, 1]} : vector<2x128xf32> to vector<2x32xf32>
    %82 = vector.extract_strided_slice %79 {offsets = [0, 64], sizes = [2, 32], strides = [1, 1]} : vector<2x128xf32> to vector<2x32xf32>
    %83 = vector.extract_strided_slice %78 {offsets = [0, 96], sizes = [2, 32], strides = [1, 1]} : vector<2x128xf32> to vector<2x32xf32>
    %84 = arith.mulf %81, %48 : vector<2x32xf32>
    %85 = arith.mulf %80, %82 : vector<2x32xf32>
    %86 = arith.addf %84, %85 : vector<2x32xf32>
    %87 = math.tanh %86 : vector<2x32xf32>
    %88 = arith.mulf %83, %87 : vector<2x32xf32>
    %89 = arith.negf %71 : vector<2x128xf32>
    %90 = math.exp %89 : vector<2x128xf32>
    %cst_16 = arith.constant 1.000000e+00 : f32
    %91 = vector.broadcast %cst_16 : f32 to vector<2x128xf32>
    %92 = arith.addf %91, %90 : vector<2x128xf32>
    %93 = arith.divf %91, %92 : vector<2x128xf32>
    %94 = math.tanh %71 : vector<2x128xf32>
    %95 = vector.extract_strided_slice %93 {offsets = [0, 0], sizes = [2, 32], strides = [1, 1]} : vector<2x128xf32> to vector<2x32xf32>
    %96 = vector.extract_strided_slice %93 {offsets = [0, 32], sizes = [2, 32], strides = [1, 1]} : vector<2x128xf32> to vector<2x32xf32>
    %97 = vector.extract_strided_slice %94 {offsets = [0, 64], sizes = [2, 32], strides = [1, 1]} : vector<2x128xf32> to vector<2x32xf32>
    %98 = vector.extract_strided_slice %93 {offsets = [0, 96], sizes = [2, 32], strides = [1, 1]} : vector<2x128xf32> to vector<2x32xf32>
    %99 = arith.mulf %96, %63 : vector<2x32xf32>
    %100 = arith.mulf %95, %97 : vector<2x32xf32>
    %101 = arith.addf %99, %100 : vector<2x32xf32>
    %102 = math.tanh %101 : vector<2x32xf32>
    %103 = arith.mulf %98, %102 : vector<2x32xf32>
    %104 = tpu.concatenate %103, %88 in 1 : vector<2x32xf32>, vector<2x32xf32> -> vector<2x64xf32>
    %105 = arith.truncf %104 : vector<2x64xf32> to vector<2x64xbf16>
    %cst_17 = arith.constant dense<0.000000e+00> : vector<2x256xf32>
    %106 = tpu.matmul %105, %7, %cst_17 {dimension_numbers = #tpu.dot_dimension_numbers<[1], [0], [0], [1], [0, 0, 1, 1], [], []>} : vector<2x64xbf16>, vector<64x256xbf16>, vector<2x256xf32> -> vector<2x256xf32>
    %107 = vector.extract_strided_slice %6 {offsets = [6, 0], sizes = [2, 128], strides = [1, 1]} : vector<16x128xf32> to vector<2x128xf32>
    %108 = vector.extract_strided_slice %106 {offsets = [0, 0], sizes = [2, 128], strides = [1, 1]} : vector<2x256xf32> to vector<2x128xf32>
    %109 = arith.addf %107, %108 : vector<2x128xf32>
    %110 = vector.extract_strided_slice %106 {offsets = [0, 128], sizes = [2, 128], strides = [1, 1]} : vector<2x256xf32> to vector<2x128xf32>
    %111 = arith.addf %110, %10 : vector<2x128xf32>
    %112 = arith.negf %111 : vector<2x128xf32>
    %113 = math.exp %112 : vector<2x128xf32>
    %cst_18 = arith.constant 1.000000e+00 : f32
    %114 = vector.broadcast %cst_18 : f32 to vector<2x128xf32>
    %115 = arith.addf %114, %113 : vector<2x128xf32>
    %116 = arith.divf %114, %115 : vector<2x128xf32>
    %117 = math.tanh %111 : vector<2x128xf32>
    %118 = vector.extract_strided_slice %116 {offsets = [0, 0], sizes = [2, 32], strides = [1, 1]} : vector<2x128xf32> to vector<2x32xf32>
    %119 = vector.extract_strided_slice %116 {offsets = [0, 32], sizes = [2, 32], strides = [1, 1]} : vector<2x128xf32> to vector<2x32xf32>
    %120 = vector.extract_strided_slice %117 {offsets = [0, 64], sizes = [2, 32], strides = [1, 1]} : vector<2x128xf32> to vector<2x32xf32>
    %121 = vector.extract_strided_slice %116 {offsets = [0, 96], sizes = [2, 32], strides = [1, 1]} : vector<2x128xf32> to vector<2x32xf32>
    %122 = arith.mulf %119, %86 : vector<2x32xf32>
    %123 = arith.mulf %118, %120 : vector<2x32xf32>
    %124 = arith.addf %122, %123 : vector<2x32xf32>
    %125 = math.tanh %124 : vector<2x32xf32>
    %126 = arith.mulf %121, %125 : vector<2x32xf32>
    %127 = arith.negf %109 : vector<2x128xf32>
    %128 = math.exp %127 : vector<2x128xf32>
    %cst_19 = arith.constant 1.000000e+00 : f32
    %129 = vector.broadcast %cst_19 : f32 to vector<2x128xf32>
    %130 = arith.addf %129, %128 : vector<2x128xf32>
    %131 = arith.divf %129, %130 : vector<2x128xf32>
    %132 = math.tanh %109 : vector<2x128xf32>
    %133 = vector.extract_strided_slice %131 {offsets = [0, 0], sizes = [2, 32], strides = [1, 1]} : vector<2x128xf32> to vector<2x32xf32>
    %134 = vector.extract_strided_slice %131 {offsets = [0, 32], sizes = [2, 32], strides = [1, 1]} : vector<2x128xf32> to vector<2x32xf32>
    %135 = vector.extract_strided_slice %132 {offsets = [0, 64], sizes = [2, 32], strides = [1, 1]} : vector<2x128xf32> to vector<2x32xf32>
    %136 = vector.extract_strided_slice %131 {offsets = [0, 96], sizes = [2, 32], strides = [1, 1]} : vector<2x128xf32> to vector<2x32xf32>
    %137 = arith.mulf %134, %101 : vector<2x32xf32>
    %138 = arith.mulf %133, %135 : vector<2x32xf32>
    %139 = arith.addf %137, %138 : vector<2x32xf32>
    %140 = math.tanh %139 : vector<2x32xf32>
    %141 = arith.mulf %136, %140 : vector<2x32xf32>
    %142 = tpu.concatenate %141, %126 in 1 : vector<2x32xf32>, vector<2x32xf32> -> vector<2x64xf32>
    %143 = arith.truncf %142 : vector<2x64xf32> to vector<2x64xbf16>
    %cst_20 = arith.constant dense<0.000000e+00> : vector<2x256xf32>
    %144 = tpu.matmul %143, %7, %cst_20 {dimension_numbers = #tpu.dot_dimension_numbers<[1], [0], [0], [1], [0, 0, 1, 1], [], []>} : vector<2x64xbf16>, vector<64x256xbf16>, vector<2x256xf32> -> vector<2x256xf32>
    %145 = vector.extract_strided_slice %6 {offsets = [8, 0], sizes = [2, 128], strides = [1, 1]} : vector<16x128xf32> to vector<2x128xf32>
    %146 = vector.extract_strided_slice %144 {offsets = [0, 0], sizes = [2, 128], strides = [1, 1]} : vector<2x256xf32> to vector<2x128xf32>
    %147 = arith.addf %145, %146 : vector<2x128xf32>
    %148 = vector.extract_strided_slice %144 {offsets = [0, 128], sizes = [2, 128], strides = [1, 1]} : vector<2x256xf32> to vector<2x128xf32>
    %149 = arith.addf %148, %10 : vector<2x128xf32>
    %150 = arith.negf %149 : vector<2x128xf32>
    %151 = math.exp %150 : vector<2x128xf32>
    %cst_21 = arith.constant 1.000000e+00 : f32
    %152 = vector.broadcast %cst_21 : f32 to vector<2x128xf32>
    %153 = arith.addf %152, %151 : vector<2x128xf32>
    %154 = arith.divf %152, %153 : vector<2x128xf32>
    %155 = math.tanh %149 : vector<2x128xf32>
    %156 = vector.extract_strided_slice %154 {offsets = [0, 0], sizes = [2, 32], strides = [1, 1]} : vector<2x128xf32> to vector<2x32xf32>
    %157 = vector.extract_strided_slice %154 {offsets = [0, 32], sizes = [2, 32], strides = [1, 1]} : vector<2x128xf32> to vector<2x32xf32>
    %158 = vector.extract_strided_slice %155 {offsets = [0, 64], sizes = [2, 32], strides = [1, 1]} : vector<2x128xf32> to vector<2x32xf32>
    %159 = vector.extract_strided_slice %154 {offsets = [0, 96], sizes = [2, 32], strides = [1, 1]} : vector<2x128xf32> to vector<2x32xf32>
    %160 = arith.mulf %157, %124 : vector<2x32xf32>
    %161 = arith.mulf %156, %158 : vector<2x32xf32>
    %162 = arith.addf %160, %161 : vector<2x32xf32>
    %163 = math.tanh %162 : vector<2x32xf32>
    %164 = arith.mulf %159, %163 : vector<2x32xf32>
    %165 = arith.negf %147 : vector<2x128xf32>
    %166 = math.exp %165 : vector<2x128xf32>
    %cst_22 = arith.constant 1.000000e+00 : f32
    %167 = vector.broadcast %cst_22 : f32 to vector<2x128xf32>
    %168 = arith.addf %167, %166 : vector<2x128xf32>
    %169 = arith.divf %167, %168 : vector<2x128xf32>
    %170 = math.tanh %147 : vector<2x128xf32>
    %171 = vector.extract_strided_slice %169 {offsets = [0, 0], sizes = [2, 32], strides = [1, 1]} : vector<2x128xf32> to vector<2x32xf32>
    %172 = vector.extract_strided_slice %169 {offsets = [0, 32], sizes = [2, 32], strides = [1, 1]} : vector<2x128xf32> to vector<2x32xf32>
    %173 = vector.extract_strided_slice %170 {offsets = [0, 64], sizes = [2, 32], strides = [1, 1]} : vector<2x128xf32> to vector<2x32xf32>
    %174 = vector.extract_strided_slice %169 {offsets = [0, 96], sizes = [2, 32], strides = [1, 1]} : vector<2x128xf32> to vector<2x32xf32>
    %175 = arith.mulf %172, %139 : vector<2x32xf32>
    %176 = arith.mulf %171, %173 : vector<2x32xf32>
    %177 = arith.addf %175, %176 : vector<2x32xf32>
    %178 = math.tanh %177 : vector<2x32xf32>
    %179 = arith.mulf %174, %178 : vector<2x32xf32>
    %180 = tpu.concatenate %179, %164 in 1 : vector<2x32xf32>, vector<2x32xf32> -> vector<2x64xf32>
    %181 = arith.truncf %180 : vector<2x64xf32> to vector<2x64xbf16>
    %cst_23 = arith.constant dense<0.000000e+00> : vector<2x256xf32>
    %182 = tpu.matmul %181, %7, %cst_23 {dimension_numbers = #tpu.dot_dimension_numbers<[1], [0], [0], [1], [0, 0, 1, 1], [], []>} : vector<2x64xbf16>, vector<64x256xbf16>, vector<2x256xf32> -> vector<2x256xf32>
    %183 = vector.extract_strided_slice %6 {offsets = [10, 0], sizes = [2, 128], strides = [1, 1]} : vector<16x128xf32> to vector<2x128xf32>
    %184 = vector.extract_strided_slice %182 {offsets = [0, 0], sizes = [2, 128], strides = [1, 1]} : vector<2x256xf32> to vector<2x128xf32>
    %185 = arith.addf %183, %184 : vector<2x128xf32>
    %186 = vector.extract_strided_slice %182 {offsets = [0, 128], sizes = [2, 128], strides = [1, 1]} : vector<2x256xf32> to vector<2x128xf32>
    %187 = arith.addf %186, %10 : vector<2x128xf32>
    %188 = arith.negf %187 : vector<2x128xf32>
    %189 = math.exp %188 : vector<2x128xf32>
    %cst_24 = arith.constant 1.000000e+00 : f32
    %190 = vector.broadcast %cst_24 : f32 to vector<2x128xf32>
    %191 = arith.addf %190, %189 : vector<2x128xf32>
    %192 = arith.divf %190, %191 : vector<2x128xf32>
    %193 = math.tanh %187 : vector<2x128xf32>
    %194 = vector.extract_strided_slice %192 {offsets = [0, 0], sizes = [2, 32], strides = [1, 1]} : vector<2x128xf32> to vector<2x32xf32>
    %195 = vector.extract_strided_slice %192 {offsets = [0, 32], sizes = [2, 32], strides = [1, 1]} : vector<2x128xf32> to vector<2x32xf32>
    %196 = vector.extract_strided_slice %193 {offsets = [0, 64], sizes = [2, 32], strides = [1, 1]} : vector<2x128xf32> to vector<2x32xf32>
    %197 = vector.extract_strided_slice %192 {offsets = [0, 96], sizes = [2, 32], strides = [1, 1]} : vector<2x128xf32> to vector<2x32xf32>
    %198 = arith.mulf %195, %162 : vector<2x32xf32>
    %199 = arith.mulf %194, %196 : vector<2x32xf32>
    %200 = arith.addf %198, %199 : vector<2x32xf32>
    %201 = math.tanh %200 : vector<2x32xf32>
    %202 = arith.mulf %197, %201 : vector<2x32xf32>
    %203 = arith.negf %185 : vector<2x128xf32>
    %204 = math.exp %203 : vector<2x128xf32>
    %cst_25 = arith.constant 1.000000e+00 : f32
    %205 = vector.broadcast %cst_25 : f32 to vector<2x128xf32>
    %206 = arith.addf %205, %204 : vector<2x128xf32>
    %207 = arith.divf %205, %206 : vector<2x128xf32>
    %208 = math.tanh %185 : vector<2x128xf32>
    %209 = vector.extract_strided_slice %207 {offsets = [0, 0], sizes = [2, 32], strides = [1, 1]} : vector<2x128xf32> to vector<2x32xf32>
    %210 = vector.extract_strided_slice %207 {offsets = [0, 32], sizes = [2, 32], strides = [1, 1]} : vector<2x128xf32> to vector<2x32xf32>
    %211 = vector.extract_strided_slice %208 {offsets = [0, 64], sizes = [2, 32], strides = [1, 1]} : vector<2x128xf32> to vector<2x32xf32>
    %212 = vector.extract_strided_slice %207 {offsets = [0, 96], sizes = [2, 32], strides = [1, 1]} : vector<2x128xf32> to vector<2x32xf32>
    %213 = arith.mulf %210, %177 : vector<2x32xf32>
    %214 = arith.mulf %209, %211 : vector<2x32xf32>
    %215 = arith.addf %213, %214 : vector<2x32xf32>
    %216 = math.tanh %215 : vector<2x32xf32>
    %217 = arith.mulf %212, %216 : vector<2x32xf32>
    %218 = tpu.concatenate %217, %202 in 1 : vector<2x32xf32>, vector<2x32xf32> -> vector<2x64xf32>
    %219 = arith.truncf %218 : vector<2x64xf32> to vector<2x64xbf16>
    %cst_26 = arith.constant dense<0.000000e+00> : vector<2x256xf32>
    %220 = tpu.matmul %219, %7, %cst_26 {dimension_numbers = #tpu.dot_dimension_numbers<[1], [0], [0], [1], [0, 0, 1, 1], [], []>} : vector<2x64xbf16>, vector<64x256xbf16>, vector<2x256xf32> -> vector<2x256xf32>
    %221 = vector.extract_strided_slice %6 {offsets = [12, 0], sizes = [2, 128], strides = [1, 1]} : vector<16x128xf32> to vector<2x128xf32>
    %222 = vector.extract_strided_slice %220 {offsets = [0, 0], sizes = [2, 128], strides = [1, 1]} : vector<2x256xf32> to vector<2x128xf32>
    %223 = arith.addf %221, %222 : vector<2x128xf32>
    %224 = vector.extract_strided_slice %220 {offsets = [0, 128], sizes = [2, 128], strides = [1, 1]} : vector<2x256xf32> to vector<2x128xf32>
    %225 = arith.addf %224, %10 : vector<2x128xf32>
    %226 = arith.negf %225 : vector<2x128xf32>
    %227 = math.exp %226 : vector<2x128xf32>
    %cst_27 = arith.constant 1.000000e+00 : f32
    %228 = vector.broadcast %cst_27 : f32 to vector<2x128xf32>
    %229 = arith.addf %228, %227 : vector<2x128xf32>
    %230 = arith.divf %228, %229 : vector<2x128xf32>
    %231 = math.tanh %225 : vector<2x128xf32>
    %232 = vector.extract_strided_slice %230 {offsets = [0, 0], sizes = [2, 32], strides = [1, 1]} : vector<2x128xf32> to vector<2x32xf32>
    %233 = vector.extract_strided_slice %230 {offsets = [0, 32], sizes = [2, 32], strides = [1, 1]} : vector<2x128xf32> to vector<2x32xf32>
    %234 = vector.extract_strided_slice %231 {offsets = [0, 64], sizes = [2, 32], strides = [1, 1]} : vector<2x128xf32> to vector<2x32xf32>
    %235 = vector.extract_strided_slice %230 {offsets = [0, 96], sizes = [2, 32], strides = [1, 1]} : vector<2x128xf32> to vector<2x32xf32>
    %236 = arith.mulf %233, %200 : vector<2x32xf32>
    %237 = arith.mulf %232, %234 : vector<2x32xf32>
    %238 = arith.addf %236, %237 : vector<2x32xf32>
    %239 = math.tanh %238 : vector<2x32xf32>
    %240 = arith.mulf %235, %239 : vector<2x32xf32>
    %241 = arith.negf %223 : vector<2x128xf32>
    %242 = math.exp %241 : vector<2x128xf32>
    %cst_28 = arith.constant 1.000000e+00 : f32
    %243 = vector.broadcast %cst_28 : f32 to vector<2x128xf32>
    %244 = arith.addf %243, %242 : vector<2x128xf32>
    %245 = arith.divf %243, %244 : vector<2x128xf32>
    %246 = math.tanh %223 : vector<2x128xf32>
    %247 = vector.extract_strided_slice %245 {offsets = [0, 0], sizes = [2, 32], strides = [1, 1]} : vector<2x128xf32> to vector<2x32xf32>
    %248 = vector.extract_strided_slice %245 {offsets = [0, 32], sizes = [2, 32], strides = [1, 1]} : vector<2x128xf32> to vector<2x32xf32>
    %249 = vector.extract_strided_slice %246 {offsets = [0, 64], sizes = [2, 32], strides = [1, 1]} : vector<2x128xf32> to vector<2x32xf32>
    %250 = vector.extract_strided_slice %245 {offsets = [0, 96], sizes = [2, 32], strides = [1, 1]} : vector<2x128xf32> to vector<2x32xf32>
    %251 = arith.mulf %248, %215 : vector<2x32xf32>
    %252 = arith.mulf %247, %249 : vector<2x32xf32>
    %253 = arith.addf %251, %252 : vector<2x32xf32>
    %254 = math.tanh %253 : vector<2x32xf32>
    %255 = arith.mulf %250, %254 : vector<2x32xf32>
    %256 = tpu.concatenate %255, %240 in 1 : vector<2x32xf32>, vector<2x32xf32> -> vector<2x64xf32>
    %257 = arith.truncf %256 : vector<2x64xf32> to vector<2x64xbf16>
    %cst_29 = arith.constant dense<0.000000e+00> : vector<2x256xf32>
    %258 = tpu.matmul %257, %7, %cst_29 {dimension_numbers = #tpu.dot_dimension_numbers<[1], [0], [0], [1], [0, 0, 1, 1], [], []>} : vector<2x64xbf16>, vector<64x256xbf16>, vector<2x256xf32> -> vector<2x256xf32>
    %259 = vector.extract_strided_slice %6 {offsets = [14, 0], sizes = [2, 128], strides = [1, 1]} : vector<16x128xf32> to vector<2x128xf32>
    %260 = vector.extract_strided_slice %258 {offsets = [0, 0], sizes = [2, 128], strides = [1, 1]} : vector<2x256xf32> to vector<2x128xf32>
    %261 = arith.addf %259, %260 : vector<2x128xf32>
    %262 = vector.extract_strided_slice %258 {offsets = [0, 128], sizes = [2, 128], strides = [1, 1]} : vector<2x256xf32> to vector<2x128xf32>
    %263 = arith.addf %262, %10 : vector<2x128xf32>
    %264 = arith.negf %263 : vector<2x128xf32>
    %265 = math.exp %264 : vector<2x128xf32>
    %cst_30 = arith.constant 1.000000e+00 : f32
    %266 = vector.broadcast %cst_30 : f32 to vector<2x128xf32>
    %267 = arith.addf %266, %265 : vector<2x128xf32>
    %268 = arith.divf %266, %267 : vector<2x128xf32>
    %269 = math.tanh %263 : vector<2x128xf32>
    %270 = vector.extract_strided_slice %268 {offsets = [0, 0], sizes = [2, 32], strides = [1, 1]} : vector<2x128xf32> to vector<2x32xf32>
    %271 = vector.extract_strided_slice %268 {offsets = [0, 32], sizes = [2, 32], strides = [1, 1]} : vector<2x128xf32> to vector<2x32xf32>
    %272 = vector.extract_strided_slice %269 {offsets = [0, 64], sizes = [2, 32], strides = [1, 1]} : vector<2x128xf32> to vector<2x32xf32>
    %273 = vector.extract_strided_slice %268 {offsets = [0, 96], sizes = [2, 32], strides = [1, 1]} : vector<2x128xf32> to vector<2x32xf32>
    %274 = arith.mulf %271, %238 : vector<2x32xf32>
    %275 = arith.mulf %270, %272 : vector<2x32xf32>
    %276 = arith.addf %274, %275 : vector<2x32xf32>
    %277 = math.tanh %276 : vector<2x32xf32>
    %278 = arith.mulf %273, %277 : vector<2x32xf32>
    %279 = arith.negf %261 : vector<2x128xf32>
    %280 = math.exp %279 : vector<2x128xf32>
    %cst_31 = arith.constant 1.000000e+00 : f32
    %281 = vector.broadcast %cst_31 : f32 to vector<2x128xf32>
    %282 = arith.addf %281, %280 : vector<2x128xf32>
    %283 = arith.divf %281, %282 : vector<2x128xf32>
    %284 = math.tanh %261 : vector<2x128xf32>
    %285 = vector.extract_strided_slice %283 {offsets = [0, 0], sizes = [2, 32], strides = [1, 1]} : vector<2x128xf32> to vector<2x32xf32>
    %286 = vector.extract_strided_slice %283 {offsets = [0, 32], sizes = [2, 32], strides = [1, 1]} : vector<2x128xf32> to vector<2x32xf32>
    %287 = vector.extract_strided_slice %284 {offsets = [0, 64], sizes = [2, 32], strides = [1, 1]} : vector<2x128xf32> to vector<2x32xf32>
    %288 = vector.extract_strided_slice %283 {offsets = [0, 96], sizes = [2, 32], strides = [1, 1]} : vector<2x128xf32> to vector<2x32xf32>
    %289 = arith.mulf %286, %253 : vector<2x32xf32>
    %290 = arith.mulf %285, %287 : vector<2x32xf32>
    %291 = arith.addf %289, %290 : vector<2x32xf32>
    %292 = math.tanh %291 : vector<2x32xf32>
    %293 = arith.mulf %288, %292 : vector<2x32xf32>
    %294 = tpu.concatenate %293, %278 in 1 : vector<2x32xf32>, vector<2x32xf32> -> vector<2x64xf32>
    %295 = arith.truncf %294 : vector<2x64xf32> to vector<2x64xbf16>
    %cst_32 = arith.constant dense<0.000000e+00> : vector<2x256xf32>
    %296 = tpu.matmul %295, %7, %cst_32 {dimension_numbers = #tpu.dot_dimension_numbers<[1], [0], [0], [1], [0, 0, 1, 1], [], []>} : vector<2x64xbf16>, vector<64x256xbf16>, vector<2x256xf32> -> vector<2x256xf32>
    %297 = vector.extract_strided_slice %296 {offsets = [0, 128], sizes = [2, 128], strides = [1, 1]} : vector<2x256xf32> to vector<2x128xf32>
    %298 = arith.addf %297, %10 : vector<2x128xf32>
    %299 = arith.negf %298 : vector<2x128xf32>
    %300 = math.exp %299 : vector<2x128xf32>
    %cst_33 = arith.constant 1.000000e+00 : f32
    %301 = vector.broadcast %cst_33 : f32 to vector<2x128xf32>
    %302 = arith.addf %301, %300 : vector<2x128xf32>
    %303 = arith.divf %301, %302 : vector<2x128xf32>
    %304 = math.tanh %298 : vector<2x128xf32>
    %305 = vector.extract_strided_slice %303 {offsets = [0, 0], sizes = [2, 32], strides = [1, 1]} : vector<2x128xf32> to vector<2x32xf32>
    %306 = vector.extract_strided_slice %303 {offsets = [0, 32], sizes = [2, 32], strides = [1, 1]} : vector<2x128xf32> to vector<2x32xf32>
    %307 = vector.extract_strided_slice %304 {offsets = [0, 64], sizes = [2, 32], strides = [1, 1]} : vector<2x128xf32> to vector<2x32xf32>
    %308 = vector.extract_strided_slice %303 {offsets = [0, 96], sizes = [2, 32], strides = [1, 1]} : vector<2x128xf32> to vector<2x32xf32>
    %309 = arith.mulf %306, %276 : vector<2x32xf32>
    %310 = arith.mulf %305, %307 : vector<2x32xf32>
    %311 = arith.addf %309, %310 : vector<2x32xf32>
    %312 = math.tanh %311 : vector<2x32xf32>
    %313 = arith.mulf %308, %312 : vector<2x32xf32>
    %314 = arith.truncf %313 : vector<2x32xf32> to vector<2x32xbf16>
    %c0_34 = arith.constant 0 : index
    %c0_35 = arith.constant 0 : index
    %315 = vector.load %arg5[%c0_34, %c0_35] : memref<32x4xbf16, #tpu.memory_space<vmem>>, vector<32x4xbf16>
    %cst_36 = arith.constant dense<0.000000e+00> : vector<2x4xf32>
    %316 = tpu.matmul %314, %315, %cst_36 {dimension_numbers = #tpu.dot_dimension_numbers<[1], [0], [0], [1], [0, 0, 1, 1], [], []>} : vector<2x32xbf16>, vector<32x4xbf16>, vector<2x4xf32> -> vector<2x4xf32>
    %c0_37 = arith.constant 0 : index
    %c0_38 = arith.constant 0 : index
    %317 = vector.load %arg6[%c0_37, %c0_38] : memref<1x4xf32, #tpu.memory_space<vmem>>, vector<1x4xf32>
    %318 = vector.broadcast %317 : vector<1x4xf32> to vector<2x4xf32>
    %319 = arith.addf %316, %318 : vector<2x4xf32>
    %c0_39 = arith.constant 0 : index
    %c0_40 = arith.constant 0 : index
    %320 = vector.load %arg7[%c0_39, %c0_40] : memref<2x4xf32, #tpu.memory_space<vmem>>, vector<2x4xf32>
    tpu.vector_store %arg7[%c0_39, %c0_40], %319 {strides = array<i32>} : memref<2x4xf32, #tpu.memory_space<vmem>>, vector<2x4xf32>,
    return
  }
}

</mosaic_0001>

<llo_original>
// kernel: lstmc_forward.1
$region0: #{lstmc_forward.1}
  #allocation0 [shape = 'u32[]', space=smem, size = 0x4, offset = 0x4, fixed_abs, tag = 'smem constant byte address 0x4 - core index']
  #allocation1 [shape = 'u32[144,128]{1,0:T(1,128)}', space=vmem, size = 0x12000, scoped, tag = 'internal scratch']
  %s0 = inlined_call_operand.vmem [shape: f32[16,22], index: 0, kind: input, shape index: {}]
  %s1 = inlined_call_operand.vmem [shape: bf16[22,128], index: 1, kind: input, shape index: {}]
  %s2 = inlined_call_operand.vmem [shape: f32[1,128], index: 2, kind: input, shape index: {}]
  %s3 = inlined_call_operand.vmem [shape: bf16[64,256], index: 3, kind: input, shape index: {}]
  %s4 = inlined_call_operand.vmem [shape: f32[1,128], index: 4, kind: input, shape index: {}]
  %s5 = inlined_call_operand.vmem [shape: bf16[32,4], index: 5, kind: input, shape index: {}]
  %s6 = inlined_call_operand.vmem [shape: f32[1,4], index: 6, kind: input, shape index: {}]
  %s7 = inlined_call_operand.hbm [shape: f32[2,4], index: 7, kind: output, shape index: {}]
  %s8 = sld [smem:[#allocation0]]
  $region38: #{lstmc_forward.1} parent=0
    _
  %s10 = ssub.s32 1, %s8
  %s11 = scalar_select 0, %s10, %s8
  $region1: #{lstmc_forward.1} parent=0
    #allocation2 [shape = 'u8[1024]{0}', space=vmem, size = 0x400, scoped, tag = 'output window, operand 0, single buffered']
    #allocation3 [shape = 's32[1]{0}', space=sflag, size = 0x4, scoped, tag = 'scoped memory for lstmc_forward.1']
    %12 = vsyncpa [#allocation3], 0
    // Predicated region
    $region2: #{lstmc_forward.1} parent=1 // pred_check
      _
    $region3: #{lstmc_forward.1} parent=1 // pred_check_branch
      %14 = sbr.rel (0) target = $region5
    $region4: #{lstmc_forward.1} parent=1 // pred_region
      _
    $region5: #{lstmc_forward.1} parent=1 // pred_fallthru
      _
    // Predicated region
    $region6: #{lstmc_forward.1} parent=1 // pred_check
      _
    $region7: #{lstmc_forward.1} parent=1 // pred_check_branch
      %16 = sbr.rel (0) target = $region9
    $region8: #{lstmc_forward.1} parent=1 // pred_region
      _
    $region9: #{lstmc_forward.1} parent=1 // pred_fallthru
      _
    // Predicated region
    $region10: #{lstmc_forward.1} parent=1 // pred_check
      _
    $region11: #{lstmc_forward.1} parent=1 // pred_check_branch
      %18 = sbr.rel (0) target = $region13
    $region12: #{lstmc_forward.1} parent=1 // pred_region
      _
    $region13: #{lstmc_forward.1} parent=1 // pred_fallthru
      _
    // Predicated region
    $region14: #{lstmc_forward.1} parent=1 // pred_check
      _
    $region15: #{lstmc_forward.1} parent=1 // pred_check_branch
      %20 = sbr.rel (0) target = $region17
    $region16: #{lstmc_forward.1} parent=1 // pred_region
      _
    $region17: #{lstmc_forward.1} parent=1 // pred_fallthru
      _
    // Predicated region
    $region18: #{lstmc_forward.1} parent=1 // pred_check
      _
    $region19: #{lstmc_forward.1} parent=1 // pred_check_branch
      %22 = sbr.rel (0) target = $region21
    $region20: #{lstmc_forward.1} parent=1 // pred_region
      _
    $region21: #{lstmc_forward.1} parent=1 // pred_fallthru
      _
    // Predicated region
    $region22: #{lstmc_forward.1} parent=1 // pred_check
      _
    $region23: #{lstmc_forward.1} parent=1 // pred_check_branch
      %24 = sbr.rel (0) target = $region25
    $region24: #{lstmc_forward.1} parent=1 // pred_region
      _
    $region25: #{lstmc_forward.1} parent=1 // pred_fallthru
      _
    // Predicated region
    $region26: #{lstmc_forward.1} parent=1 // pred_check
      _
    $region27: #{lstmc_forward.1} parent=1 // pred_check_branch
      %26 = sbr.rel (0) target = $region29
    $region28: #{lstmc_forward.1} parent=1 // pred_region
      _
    $region29: #{lstmc_forward.1} parent=1 // pred_fallthru
      _
    %v28 = vld [vmem:[%s0] sm:$0xff]
    %v29 = vld [vmem:[%s0 + $0x8] sm:$0xff]
    %v30 = vpack.c.bf16 %v29, %v28
    %v31 = vld [vmem:[%s1] sm:$0xf]
    %v32 = vld [vmem:[%s1 + $0x4] sm:$0xf]
    %v33 = vld [vmem:[%s1 + $0x8] sm:$0x7]
    %v34 = vld [vmem:[%s2] sm:$0x1]
    %v36 = vlaneseq
    %v37 = vshrl.u32 %v36, 7
    %v38 = vsub.s32 0, %v37
    %v39 = vrot.slane %v34, %v38
    %v44 = vunpack.c.l.b16 %v31
    %v45 = vunpack.c.l.b16 %v32
    %v46 = vunpack.c.l.b16 %v33
    %v47 = vpack.c.b16 %v45, %v44
    %v48 = vpack.c.b16 %v46, %v46
    %vm50 = vcmask 179200
    %v52 = vsel %vm50, %v30, 0
    %vm54 = vcmask 1042432
    %v56 = vsel %vm54, %v48, 0
    %58 = vmatprep.subr.bf16.mxu0 0
    %59 = vmatpush1.bf16.msra.mxu0 %v47
    %60 = vmatprep.subr.bf16.mxu0 0
    %61 = vmatpush1.bf16.msra.mxu0 %v56
    %62 = vmatprep.subr.bf16.mxu0 0
    %63 = vmatpush1.bf16.msra.mxu0 0
    %64 = vmatprep.subr.bf16.mxu0 0
    %65 = vmatpush1.bf16.msra.mxu0 0
    %66 = vmatprep.subr.bf16.mxu0 0
    %67 = vmatpush1.bf16.msra.mxu0 0
    %68 = vmatprep.subr.bf16.mxu0 0
    %69 = vmatpush1.bf16.msra.mxu0 0
    %70 = vmatprep.subr.bf16.mxu0 0
    %71 = vmatpush1.bf16.msra.mxu0 0
    %72 = vmatprep.subr.bf16.mxu0 0
    %73 = vmatpush1.bf16.msra.mxu0 0
    %74 = vmatprep.subr.bf16.mxu0 0
    %75 = vmatpush1.bf16.msra.mxu0 0
    %76 = vmatprep.subr.bf16.mxu0 0
    %77 = vmatpush1.bf16.msra.mxu0 0
    %78 = vmatprep.subr.bf16.mxu0 0
    %79 = vmatpush1.bf16.msra.mxu0 0
    %80 = vmatprep.subr.bf16.mxu0 0
    %81 = vmatpush1.bf16.msra.mxu0 0
    %82 = vmatprep.subr.bf16.mxu0 0
    %83 = vmatpush1.bf16.msra.mxu0 0
    %84 = vmatprep.subr.bf16.mxu0 0
    %85 = vmatpush1.bf16.msra.mxu0 0
    %86 = vmatprep.subr.bf16.mxu0 0
    %87 = vmatpush1.bf16.msra.mxu0 0
    %88 = vmatprep.subr.bf16.mxu0 0
    %89 = vmatpush1.bf16.msra.mxu0 0
    %90 = vmatprep.mubr.bf16.mxu0 0
    %91 = vmatmul.mubr.bf16.gmra.mrb[0].mxu0 %v52
    %v92 = vpop.f32.mrb[0].mxu0
    %v93 = vadd.f32 %v39, %v92
    %v94 = vpop.f32.mrb[0].mxu0
    %v95 = vpop.f32.mrb[0].mxu0
    %v96 = vadd.f32 %v39, %v95
    %v97 = vpop.f32.mrb[0].mxu0
    %98 = vdwg.mxu0
    %v99 = vld [vmem:[%s3] sm:$0xff]
    %v100 = vld [vmem:[%s3 + $0x8] sm:$0xff]
    %v101 = vld [vmem:[%s3 + $0x10] sm:$0xff]
    %v102 = vld [vmem:[%s3 + $0x18] sm:$0xff]
    %v103 = vld [vmem:[%s3 + $0x20] sm:$0xff]
    %v104 = vld [vmem:[%s3 + $0x28] sm:$0xff]
    %v105 = vld [vmem:[%s3 + $0x30] sm:$0xff]
    %v106 = vld [vmem:[%s3 + $0x38] sm:$0xff]
    %v107 = vld [vmem:[%s4] sm:$0x1]
    %v109 = vlaneseq
    %v110 = vshrl.u32 %v109, 7
    %v111 = vsub.s32 0, %v110
    %v112 = vrot.slane %v107, %v111
    %v114 = vxor.u32 %v93, 2147483648
    %v115 = vmul.f32 %v114, 1.442695
    %v116 = vpow.pop %v115
    %v117 = vadd.f32 %v116, 1.0
    %v118 = vrcp.pop %v117
    %v119 = vmul.f32 1.0, %v118
    %v120 = vtanh.pop %v93
    %v121 = vmul.f32 %v119, 0.0
    %123 = vrot.lane.b32.xlu0 %v120, 64
    %v124 = vpop.permute.xlu0 %123
    %v126 = vmul.f32 %v119, %v124
    %128 = vrot.lane.b32.xlu0 %v126, 32
    %v129 = vpop.permute.xlu0 %128
    %v131 = vadd.f32 %v121, %v129
    %v132 = vtanh.pop %v131
    %134 = vrot.lane.b32.xlu0 %v132, 64
    %v135 = vpop.permute.xlu0 %134
    %v137 = vmul.f32 %v119, %v135
    %139 = vrot.lane.b32.xlu0 %v137, 32
    %v140 = vpop.permute.xlu0 %139
    %vm142 = vcmask 261120
    %v143 = vsel %vm142, %v140, 0.0
    %v144 = vpack.c.bf16 %v143, %v143
    %v153 = vunpack.c.l.b16 %v99
    %v154 = vunpack.c.h.b16 %v99
    %v155 = vunpack.c.l.b16 %v100
    %v156 = vunpack.c.h.b16 %v100
    %v157 = vunpack.c.l.b16 %v101
    %v158 = vunpack.c.h.b16 %v101
    %v159 = vunpack.c.l.b16 %v102
    %v160 = vunpack.c.h.b16 %v102
    %v161 = vunpack.c.l.b16 %v103
    %v162 = vunpack.c.h.b16 %v103
    %v163 = vunpack.c.l.b16 %v104
    %v164 = vunpack.c.h.b16 %v104
    %v165 = vunpack.c.l.b16 %v105
    %v166 = vunpack.c.h.b16 %v105
    %v167 = vunpack.c.l.b16 %v106
    %v168 = vunpack.c.h.b16 %v106
    %v169 = vpack.c.b16 %v155, %v153
    %v170 = vpack.c.b16 %v156, %v154
    %v171 = vpack.c.b16 %v159, %v157
    %v172 = vpack.c.b16 %v160, %v158
    %v173 = vpack.c.b16 %v163, %v161
    %v174 = vpack.c.b16 %v164, %v162
    %v175 = vpack.c.b16 %v167, %v165
    %v176 = vpack.c.b16 %v168, %v166
    %vm185 = vcmask 523264
    %v187 = vsel %vm185, %v144, 0
    %189 = vmatprep.subr.bf16.mxu0 %v170
    %190 = vmatpush1.bf16.msra.mxu0 %v169
    %191 = vmatprep.subr.bf16.mxu0 %v172
    %192 = vmatpush1.bf16.msra.mxu0 %v171
    %193 = vmatprep.subr.bf16.mxu0 %v174
    %194 = vmatpush1.bf16.msra.mxu0 %v173
    %195 = vmatprep.subr.bf16.mxu0 %v176
    %196 = vmatpush1.bf16.msra.mxu0 %v175
    %197 = vmatprep.subr.bf16.mxu0 0
    %198 = vmatpush1.bf16.msra.mxu0 0
    %199 = vmatprep.subr.bf16.mxu0 0
    %200 = vmatpush1.bf16.msra.mxu0 0
    %201 = vmatprep.subr.bf16.mxu0 0
    %202 = vmatpush1.bf16.msra.mxu0 0
    %203 = vmatprep.subr.bf16.mxu0 0
    %204 = vmatpush1.bf16.msra.mxu0 0
    %205 = vmatprep.subr.bf16.mxu0 0
    %206 = vmatpush1.bf16.msra.mxu0 0
    %207 = vmatprep.subr.bf16.mxu0 0
    %208 = vmatpush1.bf16.msra.mxu0 0
    %209 = vmatprep.subr.bf16.mxu0 0
    %210 = vmatpush1.bf16.msra.mxu0 0
    %211 = vmatprep.subr.bf16.mxu0 0
    %212 = vmatpush1.bf16.msra.mxu0 0
    %213 = vmatprep.subr.bf16.mxu0 0
    %214 = vmatpush1.bf16.msra.mxu0 0
    %215 = vmatprep.subr.bf16.mxu0 0
    %216 = vmatpush1.bf16.msra.mxu0 0
    %217 = vmatprep.subr.bf16.mxu0 0
    %218 = vmatpush1.bf16.msra.mxu0 0
    %219 = vmatprep.subr.bf16.mxu0 0
    %220 = vmatpush1.bf16.msra.mxu0 0
    %221 = vmatprep.mubr.bf16.mxu0 0
    %222 = vmatmul.mubr.bf16.gmra.mrb[0].mxu0 %v187
    %v223 = vpop.f32.mrb[0].mxu0
    %v224 = vadd.f32 0.0, %v223
    %v225 = vpop.f32.mrb[0].mxu0
    %v226 = vadd.f32 0.0, %v225
    %v227 = vpop.f32.mrb[0].mxu0
    %v228 = vpop.f32.mrb[0].mxu0
    %229 = vdwg.mxu0
    %v231 = vrot.slane %v224, 6
    %v233 = vadd.f32 %v93, %v231
    %v234 = vadd.f32 %v226, %v112
    %v235 = vxor.u32 %v234, 2147483648
    %v236 = vmul.f32 %v235, 1.442695
    %v237 = vpow.pop %v236
    %v238 = vadd.f32 %v237, 1.0
    %v239 = vrcp.pop %v238
    %v240 = vmul.f32 1.0, %v239
    %v241 = vtanh.pop %v234
    %v242 = vmul.f32 %v240, 0.0
    %244 = vrot.lane.b32.xlu0 %v241, 64
    %v245 = vpop.permute.xlu0 %244
    %v247 = vmul.f32 %v240, %v245
    %249 = vrot.lane.b32.xlu0 %v247, 32
    %v250 = vpop.permute.xlu0 %249
    %v252 = vadd.f32 %v242, %v250
    %v253 = vtanh.pop %v252
    %255 = vrot.lane.b32.xlu0 %v253, 64
    %v256 = vpop.permute.xlu0 %255
    %v258 = vmul.f32 %v240, %v256
    %v259 = vxor.u32 %v233, 2147483648
    %v260 = vmul.f32 %v259, 1.442695
    %v261 = vpow.pop %v260
    %v262 = vadd.f32 %v261, 1.0
    %v263 = vrcp.pop %v262
    %v264 = vmul.f32 1.0, %v263
    %v265 = vtanh.pop %v233
    %v267 = vrot.slane %v131, 6
    %v269 = vmul.f32 %v264, %v267
    %271 = vrot.lane.b32.xlu0 %v265, 64
    %v272 = vpop.permute.xlu0 %271
    %v274 = vmul.f32 %v264, %v272
    %276 = vrot.lane.b32.xlu0 %v274, 32
    %v277 = vpop.permute.xlu0 %276
    %v279 = vadd.f32 %v269, %v277
    %v280 = vtanh.pop %v279
    %282 = vrot.lane.b32.xlu0 %v280, 64
    %v283 = vpop.permute.xlu0 %282
    %v285 = vmul.f32 %v264, %v283
    %287 = vrot.lane.b32.xlu0 %v285, 32
    %v288 = vpop.permute.xlu0 %287
    %v291 = vrot.slane %v258, 6
    %292 = vrot.lane.b32.xlu0 %v291, 64
    %v293 = vpop.permute.xlu0 %292
    %v295 = vsel %vm142, %v288, %v293
    %v296 = vpack.c.bf16 %v295, %v295
    %v298 = vrot.slane %v296, 1
    %v300 = vsel %vm185, %v298, 0
    %302 = vmatprep.subr.bf16.mxu0 %v170
    %303 = vmatpush1.bf16.msra.mxu0 %v169
    %304 = vmatprep.subr.bf16.mxu0 %v172
    %305 = vmatpush1.bf16.msra.mxu0 %v171
    %306 = vmatprep.subr.bf16.mxu0 %v174
    %307 = vmatpush1.bf16.msra.mxu0 %v173
    %308 = vmatprep.subr.bf16.mxu0 %v176
    %309 = vmatpush1.bf16.msra.mxu0 %v175
    %310 = vmatprep.subr.bf16.mxu0 0
    %311 = vmatpush1.bf16.msra.mxu0 0
    %312 = vmatprep.subr.bf16.mxu0 0
    %313 = vmatpush1.bf16.msra.mxu0 0
    %314 = vmatprep.subr.bf16.mxu0 0
    %315 = vmatpush1.bf16.msra.mxu0 0
    %316 = vmatprep.subr.bf16.mxu0 0
    %317 = vmatpush1.bf16.msra.mxu0 0
    %318 = vmatprep.subr.bf16.mxu0 0
    %319 = vmatpush1.bf16.msra.mxu0 0
    %320 = vmatprep.subr.bf16.mxu0 0
    %321 = vmatpush1.bf16.msra.mxu0 0
    %322 = vmatprep.subr.bf16.mxu0 0
    %323 = vmatpush1.bf16.msra.mxu0 0
    %324 = vmatprep.subr.bf16.mxu0 0
    %325 = vmatpush1.bf16.msra.mxu0 0
    %326 = vmatprep.subr.bf16.mxu0 0
    %327 = vmatpush1.bf16.msra.mxu0 0
    %328 = vmatprep.subr.bf16.mxu0 0
    %329 = vmatpush1.bf16.msra.mxu0 0
    %330 = vmatprep.subr.bf16.mxu0 0
    %331 = vmatpush1.bf16.msra.mxu0 0
    %332 = vmatprep.subr.bf16.mxu0 0
    %333 = vmatpush1.bf16.msra.mxu0 0
    %334 = vmatprep.mubr.bf16.mxu0 0
    %335 = vmatmul.mubr.bf16.gmra.mrb[0].mxu0 %v300
    %v336 = vpop.f32.mrb[0].mxu0
    %v337 = vadd.f32 0.0, %v336
    %v338 = vpop.f32.mrb[0].mxu0
    %v339 = vadd.f32 0.0, %v338
    %v340 = vpop.f32.mrb[0].mxu0
    %v341 = vpop.f32.mrb[0].mxu0
    %342 = vdwg.mxu0
    %v344 = vrot.slane %v337, 4
    %v346 = vadd.f32 %v93, %v344
    %v347 = vadd.f32 %v339, %v112
    %v348 = vxor.u32 %v347, 2147483648
    %v349 = vmul.f32 %v348, 1.442695
    %v350 = vpow.pop %v349
    %v351 = vadd.f32 %v350, 1.0
    %v352 = vrcp.pop %v351
    %v353 = vmul.f32 1.0, %v352
    %v354 = vtanh.pop %v347
    %v355 = vmul.f32 %v353, %v252
    %357 = vrot.lane.b32.xlu0 %v354, 64
    %v358 = vpop.permute.xlu0 %357
    %v360 = vmul.f32 %v353, %v358
    %362 = vrot.lane.b32.xlu0 %v360, 32
    %v363 = vpop.permute.xlu0 %362
    %v365 = vadd.f32 %v355, %v363
    %v366 = vtanh.pop %v365
    %368 = vrot.lane.b32.xlu0 %v366, 64
    %v369 = vpop.permute.xlu0 %368
    %v371 = vmul.f32 %v353, %v369
    %v372 = vxor.u32 %v346, 2147483648
    %v373 = vmul.f32 %v372, 1.442695
    %v374 = vpow.pop %v373
    %v375 = vadd.f32 %v374, 1.0
    %v376 = vrcp.pop %v375
    %v377 = vmul.f32 1.0, %v376
    %v378 = vtanh.pop %v346
    %v380 = vrot.slane %v279, 6
    %v382 = vmul.f32 %v377, %v380
    %384 = vrot.lane.b32.xlu0 %v378, 64
    %v385 = vpop.permute.xlu0 %384
    %v387 = vmul.f32 %v377, %v385
    %389 = vrot.lane.b32.xlu0 %v387, 32
    %v390 = vpop.permute.xlu0 %389
    %v392 = vadd.f32 %v382, %v390
    %v393 = vtanh.pop %v392
    %395 = vrot.lane.b32.xlu0 %v393, 64
    %v396 = vpop.permute.xlu0 %395
    %v398 = vmul.f32 %v377, %v396
    %400 = vrot.lane.b32.xlu0 %v398, 32
    %v401 = vpop.permute.xlu0 %400
    %v404 = vrot.slane %v371, 4
    %405 = vrot.lane.b32.xlu0 %v404, 64
    %v406 = vpop.permute.xlu0 %405
    %v408 = vsel %vm142, %v401, %v406
    %v409 = vpack.c.bf16 %v408, %v408
    %v411 = vrot.slane %v409, 2
    %v413 = vsel %vm185, %v411, 0
    %415 = vmatprep.subr.bf16.mxu0 %v170
    %416 = vmatpush1.bf16.msra.mxu0 %v169
    %417 = vmatprep.subr.bf16.mxu0 %v172
    %418 = vmatpush1.bf16.msra.mxu0 %v171
    %419 = vmatprep.subr.bf16.mxu0 %v174
    %420 = vmatpush1.bf16.msra.mxu0 %v173
    %421 = vmatprep.subr.bf16.mxu0 %v176
    %422 = vmatpush1.bf16.msra.mxu0 %v175
    %423 = vmatprep.subr.bf16.mxu0 0
    %424 = vmatpush1.bf16.msra.mxu0 0
    %425 = vmatprep.subr.bf16.mxu0 0
    %426 = vmatpush1.bf16.msra.mxu0 0
    %427 = vmatprep.subr.bf16.mxu0 0
    %428 = vmatpush1.bf16.msra.mxu0 0
    %429 = vmatprep.subr.bf16.mxu0 0
    %430 = vmatpush1.bf16.msra.mxu0 0
    %431 = vmatprep.subr.bf16.mxu0 0
    %432 = vmatpush1.bf16.msra.mxu0 0
    %433 = vmatprep.subr.bf16.mxu0 0
    %434 = vmatpush1.bf16.msra.mxu0 0
    %435 = vmatprep.subr.bf16.mxu0 0
    %436 = vmatpush1.bf16.msra.mxu0 0
    %437 = vmatprep.subr.bf16.mxu0 0
    %438 = vmatpush1.bf16.msra.mxu0 0
    %439 = vmatprep.subr.bf16.mxu0 0
    %440 = vmatpush1.bf16.msra.mxu0 0
    %441 = vmatprep.subr.bf16.mxu0 0
    %442 = vmatpush1.bf16.msra.mxu0 0
    %443 = vmatprep.subr.bf16.mxu0 0
    %444 = vmatpush1.bf16.msra.mxu0 0
    %445 = vmatprep.subr.bf16.mxu0 0
    %446 = vmatpush1.bf16.msra.mxu0 0
    %447 = vmatprep.mubr.bf16.mxu0 0
    %448 = vmatmul.mubr.bf16.gmra.mrb[0].mxu0 %v413
    %v449 = vpop.f32.mrb[0].mxu0
    %v450 = vadd.f32 0.0, %v449
    %v451 = vpop.f32.mrb[0].mxu0
    %v452 = vadd.f32 0.0, %v451
    %v453 = vpop.f32.mrb[0].mxu0
    %v454 = vpop.f32.mrb[0].mxu0
    %455 = vdwg.mxu0
    %v457 = vrot.slane %v450, 2
    %v459 = vadd.f32 %v93, %v457
    %v460 = vadd.f32 %v452, %v112
    %v461 = vxor.u32 %v460, 2147483648
    %v462 = vmul.f32 %v461, 1.442695
    %v463 = vpow.pop %v462
    %v464 = vadd.f32 %v463, 1.0
    %v465 = vrcp.pop %v464
    %v466 = vmul.f32 1.0, %v465
    %v467 = vtanh.pop %v460
    %v468 = vmul.f32 %v466, %v365
    %470 = vrot.lane.b32.xlu0 %v467, 64
    %v471 = vpop.permute.xlu0 %470
    %v473 = vmul.f32 %v466, %v471
    %475 = vrot.lane.b32.xlu0 %v473, 32
    %v476 = vpop.permute.xlu0 %475
    %v478 = vadd.f32 %v468, %v476
    %v479 = vtanh.pop %v478
    %481 = vrot.lane.b32.xlu0 %v479, 64
    %v482 = vpop.permute.xlu0 %481
    %v484 = vmul.f32 %v466, %v482
    %v485 = vxor.u32 %v459, 2147483648
    %v486 = vmul.f32 %v485, 1.442695
    %v487 = vpow.pop %v486
    %v488 = vadd.f32 %v487, 1.0
    %v489 = vrcp.pop %v488
    %v490 = vmul.f32 1.0, %v489
    %v491 = vtanh.pop %v459
    %v493 = vrot.slane %v392, 6
    %v495 = vmul.f32 %v490, %v493
    %497 = vrot.lane.b32.xlu0 %v491, 64
    %v498 = vpop.permute.xlu0 %497
    %v500 = vmul.f32 %v490, %v498
    %502 = vrot.lane.b32.xlu0 %v500, 32
    %v503 = vpop.permute.xlu0 %502
    %v505 = vadd.f32 %v495, %v503
    %v506 = vtanh.pop %v505
    %508 = vrot.lane.b32.xlu0 %v506, 64
    %v509 = vpop.permute.xlu0 %508
    %v511 = vmul.f32 %v490, %v509
    %513 = vrot.lane.b32.xlu0 %v511, 32
    %v514 = vpop.permute.xlu0 %513
    %v517 = vrot.slane %v484, 2
    %518 = vrot.lane.b32.xlu0 %v517, 64
    %v519 = vpop.permute.xlu0 %518
    %v521 = vsel %vm142, %v514, %v519
    %v522 = vpack.c.bf16 %v521, %v521
    %v524 = vrot.slane %v522, 3
    %v526 = vsel %vm185, %v524, 0
    %528 = vmatprep.subr.bf16.mxu0 %v170
    %529 = vmatpush1.bf16.msra.mxu0 %v169
    %530 = vmatprep.subr.bf16.mxu0 %v172
    %531 = vmatpush1.bf16.msra.mxu0 %v171
    %532 = vmatprep.subr.bf16.mxu0 %v174
    %533 = vmatpush1.bf16.msra.mxu0 %v173
    %534 = vmatprep.subr.bf16.mxu0 %v176
    %535 = vmatpush1.bf16.msra.mxu0 %v175
    %536 = vmatprep.subr.bf16.mxu0 0
    %537 = vmatpush1.bf16.msra.mxu0 0
    %538 = vmatprep.subr.bf16.mxu0 0
    %539 = vmatpush1.bf16.msra.mxu0 0
    %540 = vmatprep.subr.bf16.mxu0 0
    %541 = vmatpush1.bf16.msra.mxu0 0
    %542 = vmatprep.subr.bf16.mxu0 0
    %543 = vmatpush1.bf16.msra.mxu0 0
    %544 = vmatprep.subr.bf16.mxu0 0
    %545 = vmatpush1.bf16.msra.mxu0 0
    %546 = vmatprep.subr.bf16.mxu0 0
    %547 = vmatpush1.bf16.msra.mxu0 0
    %548 = vmatprep.subr.bf16.mxu0 0
    %549 = vmatpush1.bf16.msra.mxu0 0
    %550 = vmatprep.subr.bf16.mxu0 0
    %551 = vmatpush1.bf16.msra.mxu0 0
    %552 = vmatprep.subr.bf16.mxu0 0
    %553 = vmatpush1.bf16.msra.mxu0 0
    %554 = vmatprep.subr.bf16.mxu0 0
    %555 = vmatpush1.bf16.msra.mxu0 0
    %556 = vmatprep.subr.bf16.mxu0 0
    %557 = vmatpush1.bf16.msra.mxu0 0
    %558 = vmatprep.subr.bf16.mxu0 0
    %559 = vmatpush1.bf16.msra.mxu0 0
    %560 = vmatprep.mubr.bf16.mxu0 0
    %561 = vmatmul.mubr.bf16.gmra.mrb[0].mxu0 %v526
    %v562 = vpop.f32.mrb[0].mxu0
    %v563 = vadd.f32 0.0, %v562
    %v564 = vpop.f32.mrb[0].mxu0
    %v565 = vadd.f32 0.0, %v564
    %v566 = vpop.f32.mrb[0].mxu0
    %v567 = vpop.f32.mrb[0].mxu0
    %568 = vdwg.mxu0
    %v569 = vadd.f32 %v96, %v563
    %v570 = vadd.f32 %v565, %v112
    %v571 = vxor.u32 %v570, 2147483648
    %v572 = vmul.f32 %v571, 1.442695
    %v573 = vpow.pop %v572
    %v574 = vadd.f32 %v573, 1.0
    %v575 = vrcp.pop %v574
    %v576 = vmul.f32 1.0, %v575
    %v577 = vtanh.pop %v570
    %v578 = vmul.f32 %v576, %v478
    %580 = vrot.lane.b32.xlu0 %v577, 64
    %v581 = vpop.permute.xlu0 %580
    %v583 = vmul.f32 %v576, %v581
    %585 = vrot.lane.b32.xlu0 %v583, 32
    %v586 = vpop.permute.xlu0 %585
    %v588 = vadd.f32 %v578, %v586
    %v589 = vtanh.pop %v588
    %591 = vrot.lane.b32.xlu0 %v589, 64
    %v592 = vpop.permute.xlu0 %591
    %v594 = vmul.f32 %v576, %v592
    %v595 = vxor.u32 %v569, 2147483648
    %v596 = vmul.f32 %v595, 1.442695
    %v597 = vpow.pop %v596
    %v598 = vadd.f32 %v597, 1.0
    %v599 = vrcp.pop %v598
    %v600 = vmul.f32 1.0, %v599
    %v601 = vtanh.pop %v569
    %v603 = vrot.slane %v505, 6
    %v605 = vmul.f32 %v600, %v603
    %607 = vrot.lane.b32.xlu0 %v601, 64
    %v608 = vpop.permute.xlu0 %607
    %v610 = vmul.f32 %v600, %v608
    %612 = vrot.lane.b32.xlu0 %v610, 32
    %v613 = vpop.permute.xlu0 %612
    %v615 = vadd.f32 %v605, %v613
    %v616 = vtanh.pop %v615
    %618 = vrot.lane.b32.xlu0 %v616, 64
    %v619 = vpop.permute.xlu0 %618
    %v621 = vmul.f32 %v600, %v619
    %623 = vrot.lane.b32.xlu0 %v621, 32
    %v624 = vpop.permute.xlu0 %623
    %627 = vrot.lane.b32.xlu0 %v594, 64
    %v628 = vpop.permute.xlu0 %627
    %v630 = vsel %vm142, %v624, %v628
    %v631 = vpack.c.bf16 %v630, %v630
    %v633 = vsel %vm185, %v631, 0
    %635 = vmatprep.subr.bf16.mxu0 %v170
    %636 = vmatpush1.bf16.msra.mxu0 %v169
    %637 = vmatprep.subr.bf16.mxu0 %v172
    %638 = vmatpush1.bf16.msra.mxu0 %v171
    %639 = vmatprep.subr.bf16.mxu0 %v174
    %640 = vmatpush1.bf16.msra.mxu0 %v173
    %641 = vmatprep.subr.bf16.mxu0 %v176
    %642 = vmatpush1.bf16.msra.mxu0 %v175
    %643 = vmatprep.subr.bf16.mxu0 0
    %644 = vmatpush1.bf16.msra.mxu0 0
    %645 = vmatprep.subr.bf16.mxu0 0
    %646 = vmatpush1.bf16.msra.mxu0 0
    %647 = vmatprep.subr.bf16.mxu0 0
    %648 = vmatpush1.bf16.msra.mxu0 0
    %649 = vmatprep.subr.bf16.mxu0 0
    %650 = vmatpush1.bf16.msra.mxu0 0
    %651 = vmatprep.subr.bf16.mxu0 0
    %652 = vmatpush1.bf16.msra.mxu0 0
    %653 = vmatprep.subr.bf16.mxu0 0
    %654 = vmatpush1.bf16.msra.mxu0 0
    %655 = vmatprep.subr.bf16.mxu0 0
    %656 = vmatpush1.bf16.msra.mxu0 0
    %657 = vmatprep.subr.bf16.mxu0 0
    %658 = vmatpush1.bf16.msra.mxu0 0
    %659 = vmatprep.subr.bf16.mxu0 0
    %660 = vmatpush1.bf16.msra.mxu0 0
    %661 = vmatprep.subr.bf16.mxu0 0
    %662 = vmatpush1.bf16.msra.mxu0 0
    %663 = vmatprep.subr.bf16.mxu0 0
    %664 = vmatpush1.bf16.msra.mxu0 0
    %665 = vmatprep.subr.bf16.mxu0 0
    %666 = vmatpush1.bf16.msra.mxu0 0
    %667 = vmatprep.mubr.bf16.mxu0 0
    %668 = vmatmul.mubr.bf16.gmra.mrb[0].mxu0 %v633
    %v669 = vpop.f32.mrb[0].mxu0
    %v670 = vadd.f32 0.0, %v669
    %v671 = vpop.f32.mrb[0].mxu0
    %v672 = vadd.f32 0.0, %v671
    %v673 = vpop.f32.mrb[0].mxu0
    %v674 = vpop.f32.mrb[0].mxu0
    %675 = vdwg.mxu0
    %v677 = vrot.slane %v670, 6
    %v679 = vadd.f32 %v96, %v677
    %v680 = vadd.f32 %v672, %v112
    %v681 = vxor.u32 %v680, 2147483648
    %v682 = vmul.f32 %v681, 1.442695
    %v683 = vpow.pop %v682
    %v684 = vadd.f32 %v683, 1.0
    %v685 = vrcp.pop %v684
    %v686 = vmul.f32 1.0, %v685
    %v687 = vtanh.pop %v680
    %v688 = vmul.f32 %v686, %v588
    %690 = vrot.lane.b32.xlu0 %v687, 64
    %v691 = vpop.permute.xlu0 %690
    %v693 = vmul.f32 %v686, %v691
    %695 = vrot.lane.b32.xlu0 %v693, 32
    %v696 = vpop.permute.xlu0 %695
    %v698 = vadd.f32 %v688, %v696
    %v699 = vtanh.pop %v698
    %701 = vrot.lane.b32.xlu0 %v699, 64
    %v702 = vpop.permute.xlu0 %701
    %v704 = vmul.f32 %v686, %v702
    %v705 = vxor.u32 %v679, 2147483648
    %v706 = vmul.f32 %v705, 1.442695
    %v707 = vpow.pop %v706
    %v708 = vadd.f32 %v707, 1.0
    %v709 = vrcp.pop %v708
    %v710 = vmul.f32 1.0, %v709
    %v711 = vtanh.pop %v679
    %v713 = vrot.slane %v615, 6
    %v715 = vmul.f32 %v710, %v713
    %717 = vrot.lane.b32.xlu0 %v711, 64
    %v718 = vpop.permute.xlu0 %717
    %v720 = vmul.f32 %v710, %v718
    %722 = vrot.lane.b32.xlu0 %v720, 32
    %v723 = vpop.permute.xlu0 %722
    %v725 = vadd.f32 %v715, %v723
    %v726 = vtanh.pop %v725
    %728 = vrot.lane.b32.xlu0 %v726, 64
    %v729 = vpop.permute.xlu0 %728
    %v731 = vmul.f32 %v710, %v729
    %733 = vrot.lane.b32.xlu0 %v731, 32
    %v734 = vpop.permute.xlu0 %733
    %v737 = vrot.slane %v704, 6
    %738 = vrot.lane.b32.xlu0 %v737, 64
    %v739 = vpop.permute.xlu0 %738
    %v741 = vsel %vm142, %v734, %v739
    %v742 = vpack.c.bf16 %v741, %v741
    %v744 = vrot.slane %v742, 1
    %v746 = vsel %vm185, %v744, 0
    %748 = vmatprep.subr.bf16.mxu0 %v170
    %749 = vmatpush1.bf16.msra.mxu0 %v169
    %750 = vmatprep.subr.bf16.mxu0 %v172
    %751 = vmatpush1.bf16.msra.mxu0 %v171
    %752 = vmatprep.subr.bf16.mxu0 %v174
    %753 = vmatpush1.bf16.msra.mxu0 %v173
    %754 = vmatprep.subr.bf16.mxu0 %v176
    %755 = vmatpush1.bf16.msra.mxu0 %v175
    %756 = vmatprep.subr.bf16.mxu0 0
    %757 = vmatpush1.bf16.msra.mxu0 0
    %758 = vmatprep.subr.bf16.mxu0 0
    %759 = vmatpush1.bf16.msra.mxu0 0
    %760 = vmatprep.subr.bf16.mxu0 0
    %761 = vmatpush1.bf16.msra.mxu0 0
    %762 = vmatprep.subr.bf16.mxu0 0
    %763 = vmatpush1.bf16.msra.mxu0 0
    %764 = vmatprep.subr.bf16.mxu0 0
    %765 = vmatpush1.bf16.msra.mxu0 0
    %766 = vmatprep.subr.bf16.mxu0 0
    %767 = vmatpush1.bf16.msra.mxu0 0
    %768 = vmatprep.subr.bf16.mxu0 0
    %769 = vmatpush1.bf16.msra.mxu0 0
    %770 = vmatprep.subr.bf16.mxu0 0
    %771 = vmatpush1.bf16.msra.mxu0 0
    %772 = vmatprep.subr.bf16.mxu0 0
    %773 = vmatpush1.bf16.msra.mxu0 0
    %774 = vmatprep.subr.bf16.mxu0 0
    %775 = vmatpush1.bf16.msra.mxu0 0
    %776 = vmatprep.subr.bf16.mxu0 0
    %777 = vmatpush1.bf16.msra.mxu0 0
    %778 = vmatprep.subr.bf16.mxu0 0
    %779 = vmatpush1.bf16.msra.mxu0 0
    %780 = vmatprep.mubr.bf16.mxu0 0
    %781 = vmatmul.mubr.bf16.gmra.mrb[0].mxu0 %v746
    %v782 = vpop.f32.mrb[0].mxu0
    %v783 = vadd.f32 0.0, %v782
    %v784 = vpop.f32.mrb[0].mxu0
    %v785 = vadd.f32 0.0, %v784
    %v786 = vpop.f32.mrb[0].mxu0
    %v787 = vpop.f32.mrb[0].mxu0
    %788 = vdwg.mxu0
    %v790 = vrot.slane %v783, 4
    %v792 = vadd.f32 %v96, %v790
    %v793 = vadd.f32 %v785, %v112
    %v794 = vxor.u32 %v793, 2147483648
    %v795 = vmul.f32 %v794, 1.442695
    %v796 = vpow.pop %v795
    %v797 = vadd.f32 %v796, 1.0
    %v798 = vrcp.pop %v797
    %v799 = vmul.f32 1.0, %v798
    %v800 = vtanh.pop %v793
    %v801 = vmul.f32 %v799, %v698
    %803 = vrot.lane.b32.xlu0 %v800, 64
    %v804 = vpop.permute.xlu0 %803
    %v806 = vmul.f32 %v799, %v804
    %808 = vrot.lane.b32.xlu0 %v806, 32
    %v809 = vpop.permute.xlu0 %808
    %v811 = vadd.f32 %v801, %v809
    %v812 = vtanh.pop %v811
    %814 = vrot.lane.b32.xlu0 %v812, 64
    %v815 = vpop.permute.xlu0 %814
    %v817 = vmul.f32 %v799, %v815
    %v818 = vxor.u32 %v792, 2147483648
    %v819 = vmul.f32 %v818, 1.442695
    %v820 = vpow.pop %v819
    %v821 = vadd.f32 %v820, 1.0
    %v822 = vrcp.pop %v821
    %v823 = vmul.f32 1.0, %v822
    %v824 = vtanh.pop %v792
    %v826 = vrot.slane %v725, 6
    %v828 = vmul.f32 %v823, %v826
    %830 = vrot.lane.b32.xlu0 %v824, 64
    %v831 = vpop.permute.xlu0 %830
    %v833 = vmul.f32 %v823, %v831
    %835 = vrot.lane.b32.xlu0 %v833, 32
    %v836 = vpop.permute.xlu0 %835
    %v838 = vadd.f32 %v828, %v836
    %v839 = vtanh.pop %v838
    %841 = vrot.lane.b32.xlu0 %v839, 64
    %v842 = vpop.permute.xlu0 %841
    %v844 = vmul.f32 %v823, %v842
    %846 = vrot.lane.b32.xlu0 %v844, 32
    %v847 = vpop.permute.xlu0 %846
    %v850 = vrot.slane %v817, 4
    %851 = vrot.lane.b32.xlu0 %v850, 64
    %v852 = vpop.permute.xlu0 %851
    %v854 = vsel %vm142, %v847, %v852
    %v855 = vpack.c.bf16 %v854, %v854
    %v857 = vrot.slane %v855, 2
    %v859 = vsel %vm185, %v857, 0
    %861 = vmatprep.subr.bf16.mxu0 %v170
    %862 = vmatpush1.bf16.msra.mxu0 %v169
    %863 = vmatprep.subr.bf16.mxu0 %v172
    %864 = vmatpush1.bf16.msra.mxu0 %v171
    %865 = vmatprep.subr.bf16.mxu0 %v174
    %866 = vmatpush1.bf16.msra.mxu0 %v173
    %867 = vmatprep.subr.bf16.mxu0 %v176
    %868 = vmatpush1.bf16.msra.mxu0 %v175
    %869 = vmatprep.subr.bf16.mxu0 0
    %870 = vmatpush1.bf16.msra.mxu0 0
    %871 = vmatprep.subr.bf16.mxu0 0
    %872 = vmatpush1.bf16.msra.mxu0 0
    %873 = vmatprep.subr.bf16.mxu0 0
    %874 = vmatpush1.bf16.msra.mxu0 0
    %875 = vmatprep.subr.bf16.mxu0 0
    %876 = vmatpush1.bf16.msra.mxu0 0
    %877 = vmatprep.subr.bf16.mxu0 0
    %878 = vmatpush1.bf16.msra.mxu0 0
    %879 = vmatprep.subr.bf16.mxu0 0
    %880 = vmatpush1.bf16.msra.mxu0 0
    %881 = vmatprep.subr.bf16.mxu0 0
    %882 = vmatpush1.bf16.msra.mxu0 0
    %883 = vmatprep.subr.bf16.mxu0 0
    %884 = vmatpush1.bf16.msra.mxu0 0
    %885 = vmatprep.subr.bf16.mxu0 0
    %886 = vmatpush1.bf16.msra.mxu0 0
    %887 = vmatprep.subr.bf16.mxu0 0
    %888 = vmatpush1.bf16.msra.mxu0 0
    %889 = vmatprep.subr.bf16.mxu0 0
    %890 = vmatpush1.bf16.msra.mxu0 0
    %891 = vmatprep.subr.bf16.mxu0 0
    %892 = vmatpush1.bf16.msra.mxu0 0
    %893 = vmatprep.mubr.bf16.mxu0 0
    %894 = vmatmul.mubr.bf16.gmra.mrb[0].mxu0 %v859
    %v895 = vpop.f32.mrb[0].mxu0
    %v896 = vadd.f32 0.0, %v895
    %v897 = vpop.f32.mrb[0].mxu0
    %v898 = vadd.f32 0.0, %v897
    %v899 = vpop.f32.mrb[0].mxu0
    %v900 = vpop.f32.mrb[0].mxu0
    %901 = vdwg.mxu0
    %v903 = vrot.slane %v896, 2
    %v905 = vadd.f32 %v96, %v903
    %v906 = vadd.f32 %v898, %v112
    %v907 = vxor.u32 %v906, 2147483648
    %v908 = vmul.f32 %v907, 1.442695
    %v909 = vpow.pop %v908
    %v910 = vadd.f32 %v909, 1.0
    %v911 = vrcp.pop %v910
    %v912 = vmul.f32 1.0, %v911
    %v913 = vtanh.pop %v906
    %v914 = vmul.f32 %v912, %v811
    %916 = vrot.lane.b32.xlu0 %v913, 64
    %v917 = vpop.permute.xlu0 %916
    %v919 = vmul.f32 %v912, %v917
    %921 = vrot.lane.b32.xlu0 %v919, 32
    %v922 = vpop.permute.xlu0 %921
    %v924 = vadd.f32 %v914, %v922
    %v925 = vtanh.pop %v924
    %927 = vrot.lane.b32.xlu0 %v925, 64
    %v928 = vpop.permute.xlu0 %927
    %v930 = vmul.f32 %v912, %v928
    %v931 = vxor.u32 %v905, 2147483648
    %v932 = vmul.f32 %v931, 1.442695
    %v933 = vpow.pop %v932
    %v934 = vadd.f32 %v933, 1.0
    %v935 = vrcp.pop %v934
    %v936 = vmul.f32 1.0, %v935
    %v937 = vtanh.pop %v905
    %v939 = vrot.slane %v838, 6
    %v941 = vmul.f32 %v936, %v939
    %943 = vrot.lane.b32.xlu0 %v937, 64
    %v944 = vpop.permute.xlu0 %943
    %v946 = vmul.f32 %v936, %v944
    %948 = vrot.lane.b32.xlu0 %v946, 32
    %v949 = vpop.permute.xlu0 %948
    %v951 = vadd.f32 %v941, %v949
    %v952 = vtanh.pop %v951
    %954 = vrot.lane.b32.xlu0 %v952, 64
    %v955 = vpop.permute.xlu0 %954
    %v957 = vmul.f32 %v936, %v955
    %959 = vrot.lane.b32.xlu0 %v957, 32
    %v960 = vpop.permute.xlu0 %959
    %v963 = vrot.slane %v930, 2
    %964 = vrot.lane.b32.xlu0 %v963, 64
    %v965 = vpop.permute.xlu0 %964
    %v967 = vsel %vm142, %v960, %v965
    %v968 = vpack.c.bf16 %v967, %v967
    %v970 = vrot.slane %v968, 3
    %v972 = vsel %vm185, %v970, 0
    %974 = vmatprep.subr.bf16.mxu0 %v170
    %975 = vmatpush1.bf16.msra.mxu0 %v169
    %976 = vmatprep.subr.bf16.mxu0 %v172
    %977 = vmatpush1.bf16.msra.mxu0 %v171
    %978 = vmatprep.subr.bf16.mxu0 %v174
    %979 = vmatpush1.bf16.msra.mxu0 %v173
    %980 = vmatprep.subr.bf16.mxu0 %v176
    %981 = vmatpush1.bf16.msra.mxu0 %v175
    %982 = vmatprep.subr.bf16.mxu0 0
    %983 = vmatpush1.bf16.msra.mxu0 0
    %984 = vmatprep.subr.bf16.mxu0 0
    %985 = vmatpush1.bf16.msra.mxu0 0
    %986 = vmatprep.subr.bf16.mxu0 0
    %987 = vmatpush1.bf16.msra.mxu0 0
    %988 = vmatprep.subr.bf16.mxu0 0
    %989 = vmatpush1.bf16.msra.mxu0 0
    %990 = vmatprep.subr.bf16.mxu0 0
    %991 = vmatpush1.bf16.msra.mxu0 0
    %992 = vmatprep.subr.bf16.mxu0 0
    %993 = vmatpush1.bf16.msra.mxu0 0
    %994 = vmatprep.subr.bf16.mxu0 0
    %995 = vmatpush1.bf16.msra.mxu0 0
    %996 = vmatprep.subr.bf16.mxu0 0
    %997 = vmatpush1.bf16.msra.mxu0 0
    %998 = vmatprep.subr.bf16.mxu0 0
    %999 = vmatpush1.bf16.msra.mxu0 0
    %1000 = vmatprep.subr.bf16.mxu0 0
    %1001 = vmatpush1.bf16.msra.mxu0 0
    %1002 = vmatprep.subr.bf16.mxu0 0
    %1003 = vmatpush1.bf16.msra.mxu0 0
    %1004 = vmatprep.subr.bf16.mxu0 0
    %1005 = vmatpush1.bf16.msra.mxu0 0
    %1006 = vmatprep.mubr.bf16.mxu0 0
    %1007 = vmatmul.mubr.bf16.gmra.mrb[0].mxu0 %v972
    %v1008 = vpop.f32.mrb[0].mxu0
    %v1009 = vpop.f32.mrb[0].mxu0
    %v1010 = vadd.f32 0.0, %v1009
    %v1011 = vpop.f32.mrb[0].mxu0
    %v1012 = vpop.f32.mrb[0].mxu0
    %1013 = vdwg.mxu0
    %v1014 = vadd.f32 %v1010, %v112
    %v1015 = vxor.u32 %v1014, 2147483648
    %v1016 = vmul.f32 %v1015, 1.442695
    %v1017 = vpow.pop %v1016
    %v1018 = vadd.f32 %v1017, 1.0
    %v1019 = vrcp.pop %v1018
    %v1020 = vmul.f32 1.0, %v1019
    %v1021 = vtanh.pop %v1014
    %v1022 = vmul.f32 %v1020, %v924
    %1024 = vrot.lane.b32.xlu0 %v1021, 64
    %v1025 = vpop.permute.xlu0 %1024
    %v1027 = vmul.f32 %v1020, %v1025
    %1029 = vrot.lane.b32.xlu0 %v1027, 32
    %v1030 = vpop.permute.xlu0 %1029
    %v1032 = vadd.f32 %v1022, %v1030
    %v1033 = vtanh.pop %v1032
    %1035 = vrot.lane.b32.xlu0 %v1033, 64
    %v1036 = vpop.permute.xlu0 %1035
    %v1038 = vmul.f32 %v1020, %v1036
    %v1039 = vpack.c.bf16 %v1038, %v1038
    %v1040 = vld [vmem:[%s5] sm:$0xf]
    %v1041 = vld [vmem:[%s5 + $0x4] sm:$0xf]
    %v1042 = vld [vmem:[%s5 + $0x8] sm:$0xf]
    %v1043 = vld [vmem:[%s5 + $0xc] sm:$0xf]
    %v1044 = vld [vmem:[%s6] sm:$0x1]
    %v1046 = vlaneseq
    %v1047 = vshrl.u32 %v1046, 7
    %v1048 = vsub.s32 0, %v1047
    %v1049 = vrot.slane %v1044, %v1048
    %1052 = vrot.lane.b32.xlu0 %v1039, 32
    %v1053 = vpop.permute.xlu0 %1052
    %v1058 = vunpack.c.l.b16 %v1040
    %v1059 = vunpack.c.l.b16 %v1041
    %v1060 = vunpack.c.l.b16 %v1042
    %v1061 = vunpack.c.l.b16 %v1043
    %v1062 = vpack.c.b16 %v1059, %v1058
    %v1063 = vpack.c.b16 %v1061, %v1060
    %v1067 = vsel %vm142, %v1053, 0
    %1069 = vmatprep.subr.bf16.mxu0 0
    %1070 = vmatpush1.bf16.msra.mxu0 %v1062
    %1071 = vmatprep.subr.bf16.mxu0 0
    %1072 = vmatpush1.bf16.msra.mxu0 %v1063
    %1073 = vmatprep.subr.bf16.mxu0 0
    %1074 = vmatpush1.bf16.msra.mxu0 0
    %1075 = vmatprep.subr.bf16.mxu0 0
    %1076 = vmatpush1.bf16.msra.mxu0 0
    %1077 = vmatprep.subr.bf16.mxu0 0
    %1078 = vmatpush1.bf16.msra.mxu0 0
    %1079 = vmatprep.subr.bf16.mxu0 0
    %1080 = vmatpush1.bf16.msra.mxu0 0
    %1081 = vmatprep.subr.bf16.mxu0 0
    %1082 = vmatpush1.bf16.msra.mxu0 0
    %1083 = vmatprep.subr.bf16.mxu0 0
    %1084 = vmatpush1.bf16.msra.mxu0 0
    %1085 = vmatprep.subr.bf16.mxu0 0
    %1086 = vmatpush1.bf16.msra.mxu0 0
    %1087 = vmatprep.subr.bf16.mxu0 0
    %1088 = vmatpush1.bf16.msra.mxu0 0
    %1089 = vmatprep.subr.bf16.mxu0 0
    %1090 = vmatpush1.bf16.msra.mxu0 0
    %1091 = vmatprep.subr.bf16.mxu0 0
    %1092 = vmatpush1.bf16.msra.mxu0 0
    %1093 = vmatprep.subr.bf16.mxu0 0
    %1094 = vmatpush1.bf16.msra.mxu0 0
    %1095 = vmatprep.subr.bf16.mxu0 0
    %1096 = vmatpush1.bf16.msra.mxu0 0
    %1097 = vmatprep.subr.bf16.mxu0 0
    %1098 = vmatpush1.bf16.msra.mxu0 0
    %1099 = vmatprep.subr.bf16.mxu0 0
    %1100 = vmatpush1.bf16.msra.mxu0 0
    %1101 = vmatprep.mubr.bf16.mxu0 0
    %1102 = vmatmul.mubr.bf16.gmra.mrb[0].mxu0 %v1067
    %v1103 = vpop.f32.mrb[0].mxu0
    %v1104 = vadd.f32 %v1049, %v1103
    %v1105 = vpop.f32.mrb[0].mxu0
    %v1106 = vpop.f32.mrb[0].mxu0
    %v1107 = vpop.f32.mrb[0].mxu0
    %1108 = vdwg.mxu0
    %vm1109 = vcmask 25600
    %1110 = vst.msk [vmem:[#allocation2] sm:$0x3] %vm1109, %v1104
    // Predicated region
    $region30: #{lstmc_forward.1} parent=1 // pred_check
      _
    $region31: #{lstmc_forward.1} parent=1 // pred_check_branch
      %1112 = sbr.rel (0) target = $region33
    $region32: #{lstmc_forward.1} parent=1 // pred_region
      %s1114 = ssub.s32 32, 32
      %1115 = vsyncadd [#allocation3], %s1114
      %s1117 = sshll.u32 [#allocation2], 4
      %s1118 = int_to_ptr.vmem [resolvable:$true] %s1117
      %1120 = dma.vmem_to_hbm [thread:$0]  %s1118, 32, %s7, [#allocation3]
    $region33: #{lstmc_forward.1} parent=1 // pred_fallthru
      _
    // Predicated region
    $region34: #{lstmc_forward.1} parent=1 // pred_check
      _
    $region35: #{lstmc_forward.1} parent=1 // pred_check_branch
      %1122 = sbr.rel (0) target = $region37
    $region36: #{lstmc_forward.1} parent=1 // pred_region
      %1123 = dma.done [#allocation3], 32
    $region37: #{lstmc_forward.1} parent=1 // pred_fallthru
      _
    %1124 = vsyncpa [#allocation3], 1

</llo_original>
